<compile_context>
chip_gen: v7x
topology: tpu7x:2x2x1
jax: 0.10.0
libtpu: 0.0.40
codegen_flags: <defaults>
</compile_context>

<pallas_src>
import jax
import jax.numpy as jnp
import numpy as np
from jax import lax
from jax.experimental import pallas as pl
from jax.experimental.pallas import tpu as pltpu

# Hyperparameters consistent with
# EnCas12a(len_seq, n_filters, n_conv1d, kernel_size, fc_units, n_fc, dropout)
LEN_SEQ = 16
N_FILTERS = 32
N_CONV1D = 2          # layer1 + 1 extra conv layer
KERNEL_SIZE = 5
FC_UNITS = 32
N_FC = 2              # layer2 + 1 extra fc layer
DROPOUT = 0.3         # eval mode -> identity
PAD = (KERNEL_SIZE - 1) // 2
BATCH = 2


def _round_up(n, m):
    return ((n + m - 1) // m) * m


def _encas12a_kernel(x_ref, w1_ref, b1_ref, w2_ref, b2_ref,
                     fc1w_ref, fc1b_ref, fc2w_ref, fc2b_ref,
                     outw_ref, outb_ref, o_ref):
    """One batch tile (bt samples) of the full forward pass.

    x_ref    : (bt, L*Cin)   bf16 channels-last flattened input
    w1_ref   : (L*Cin, L*F)  bf16 banded conv1 (sequence zero-padding baked in)
    w2_ref   : (L*F,  L*F)   bf16 banded conv2
    b1/b2    : (1, L*F)      f32 position-tiled conv biases
    fc1w_ref : (L*F, U)      bf16 (pre-permuted to channels-last flatten order)
    fc2w_ref : (U, U)        bf16
    outw_ref : (8, U)        bf16 (row 0 = head weights, rows 1..7 zero padding)
    outb_ref : (1, 1)        f32
    o_ref    : (1, 1, bt)    f32 sigmoid outputs, batch on the lane axis
    """
    bf16, f32 = jnp.bfloat16, jnp.float32

    # conv1 + ReLU as one banded matmul (contraction L*Cin, output width L*F).
    h = jnp.dot(x_ref[...], w1_ref[...], preferred_element_type=f32) + b1_ref[...]
    h = jnp.maximum(h, 0.0)
    # conv2 + ReLU as one banded matmul.
    h = jnp.dot(h.astype(bf16), w2_ref[...], preferred_element_type=f32) + b2_ref[...]
    h = jnp.maximum(h, 0.0)
    # fc1 + ReLU (+ dropout: eval-mode identity).
    y = jnp.dot(h.astype(bf16), fc1w_ref[...], preferred_element_type=f32) + fc1b_ref[...]
    y = jnp.maximum(y, 0.0)
    # fc2 + ReLU (+ dropout: eval-mode identity).
    y = jnp.dot(y.astype(bf16), fc2w_ref[...], preferred_element_type=f32) + fc2b_ref[...]
    y = jnp.maximum(y, 0.0)
    # Sigmoid head as an NT matmul (same dimension-number form flash-attention uses):
    # (8, U) x (bt, U) -> (8, bt).  The MXU lands the batch on the lane axis, so the
    # store below is lane-dense.  Row 0 carries the real head; rows 1..7 are zeros.
    logits = lax.dot_general(outw_ref[...], y.astype(bf16),
                             (((1,), (1,)), ((), ())),
                             preferred_element_type=f32)
    o_ref[...] = jax.nn.sigmoid(logits[0:1, :] + outb_ref[...]).reshape(1, 1, -1)


def prepare_params(params):
    """One-time (weight-load-time) conversion of PyTorch-layout weights to kernel layout."""
    F, Cin, K = params["conv1_w"].shape
    U, FL = params["fc1_w"].shape
    L = FL // F
    pad = (K - 1) // 2
    f32, bf16 = jnp.float32, jnp.bfloat16

    def banded(w_oik, length):
        # Expand a PyTorch Conv1d weight (F_out, C_in, K) into a channels-last banded
        # matrix (length*C_in, length*F_out) with zero sequence-padding baked in:
        #   band[li*C_in + c, lo*F_out + f] = w[f, c, li - lo + pad]  (0 outside band)
        w = np.asarray(w_oik, np.float32)
        fo, ci, k = w.shape
        band = np.zeros((length * ci, length * fo), np.float32)
        for lo in range(length):
            for t in range(k):
                li = lo + t - pad
                if 0 <= li < length:
                    band[li * ci:(li + 1) * ci, lo * fo:(lo + 1) * fo] = w[:, :, t].T
        return jnp.asarray(band, bf16)

    # Head weight padded to 8 sublane rows (row 0 real, rest zero) for a clean NT matmul.
    outw = np.zeros((8, U), np.float32)
    outw[0] = np.asarray(params["out_w"], np.float32).reshape(U)

    return {
        "w1": banded(params["conv1_w"], L),                              # (L*Cin, L*F)
        "b1": jnp.tile(params["conv1_b"].astype(f32), L).reshape(1, L * F),
        "w2": banded(params["conv2_w"], L),                              # (L*F, L*F)
        "b2": jnp.tile(params["conv2_b"].astype(f32), L).reshape(1, L * F),
        # fc1: permute (U, F*L) so a channels-last flatten (l*F + c) matches PyTorch's
        # channel-major flatten (c*L + l).
        "fc1w": params["fc1_w"].reshape(U, F, L).transpose(2, 1, 0)
                .reshape(L * F, U).astype(bf16),
        "fc1b": params["fc1_b"].reshape(1, U).astype(f32),
        "fc2w": params["fc2_w"].T.astype(bf16),
        "fc2b": params["fc2_b"].reshape(1, U).astype(f32),
        "outw": jnp.asarray(outw, bf16),                                 # (8, U)
        "outb": params["out_b"].reshape(1, 1).astype(f32),
    }


def encas12a_forward(x_ncl, kp, *, block_b=1024):
    """x_ncl: (B, Cin, L) f32 in PyTorch NCL layout; kp: prepare_params() output.

    Returns (B, 1) f32 sigmoid outputs.
    """
    B, Cin, L = x_ncl.shape
    LCin, LF = kp["w1"].shape
    U = kp["fc1w"].shape[1]
    assert LCin == L * Cin

    # Samples per grid step.  Keep blocks 128-aligned when tiling; for large batches
    # that would otherwise fit in one tile, split into >=2 tiles so both v7x
    # TensorCores get work (costs one extra ~0.35us step on single-TC chips).
    bt = min(_round_up(block_b, 128), _round_up(B, 8))
    if B >= 256 and pl.cdiv(B, bt) < 2:
        bt = _round_up(pl.cdiv(B, 2), 128)
    num_tiles = pl.cdiv(B, bt)
    B_pad = num_tiles * bt

    # Per-call host work: NCL -> channels-last flat (B, L*Cin) bf16 + batch padding.
    x = jnp.transpose(x_ncl, (0, 2, 1)).reshape(B, L * Cin).astype(jnp.bfloat16)
    if B_pad != B:
        x = jnp.pad(x, ((0, B_pad - B), (0, 0)))

    weights = (kp["w1"], kp["b1"], kp["w2"], kp["b2"], kp["fc1w"], kp["fc1b"],
               kp["fc2w"], kp["fc2b"], kp["outw"], kp["outb"])

    def resident(a):  # weights: full block, constant index -> stay VMEM-resident
        zeros = (0,) * a.ndim
        return pl.BlockSpec(a.shape, lambda i, z=zeros: z)

    flops = 2 * B_pad * (LCin * LF + LF * LF + LF * U + U * U + 8 * U)
    bytes_accessed = (int(x.size) * x.dtype.itemsize
                      + sum(int(w.size) * w.dtype.itemsize for w in weights)
                      + num_tiles * bt * 4)

    out = pl.pallas_call(
        _encas12a_kernel,
        out_shape=jax.ShapeDtypeStruct((num_tiles, 1, bt), jnp.float32),
        grid=(num_tiles,),
        in_specs=[pl.BlockSpec((bt, L * Cin), lambda i: (i, 0))]
                 + [resident(w) for w in weights],
        out_specs=pl.BlockSpec((1, 1, bt), lambda i: (i, 0, 0)),
        compiler_params=pltpu.CompilerParams(
            dimension_semantics=("parallel",),
            vmem_limit_bytes=32 * 1024 * 1024),   # safe on v5e/v6e/v7x; >> live set
        cost_estimate=pl.CostEstimate(flops=int(flops), transcendentals=int(B_pad),
                                      bytes_accessed=int(bytes_accessed)),
    )(x, *weights)
    # (num_tiles, 1, bt) -> (B, 1); tile-major order matches sample order.
    return out.reshape(B_pad, 1)[:B]


def encas12a_reference(x_ncl, params):
    """Pure-JAX reference replicating PyTorch (NCL) semantics exactly, all f32."""
    h = lax.conv_general_dilated(
        x_ncl, params["conv1_w"], window_strides=(1,), padding=[(PAD, PAD)],
        dimension_numbers=("NCH", "OIH", "NCH"))
    h = jnp.maximum(h + params["conv1_b"][None, :, None], 0.0)
    h = lax.conv_general_dilated(
        h, params["conv2_w"], window_strides=(1,), padding=[(PAD, PAD)],
        dimension_numbers=("NCH", "OIH", "NCH"))
    h = jnp.maximum(h + params["conv2_b"][None, :, None], 0.0)
    flat = h.reshape(h.shape[0], -1)                     # channel-major (PyTorch) flatten
    y = jnp.maximum(flat @ params["fc1_w"].T + params["fc1_b"], 0.0)
    y = jnp.maximum(y @ params["fc2_w"].T + params["fc2_b"], 0.0)
    return jax.nn.sigmoid(y @ params["out_w"].T + params["out_b"])


if __name__ == "__main__":
    key = jax.random.PRNGKey(0)
    keys = jax.random.split(key, 11)
    params = {
        "conv1_w": 0.1 * jax.random.normal(keys[0], (N_FILTERS, 4, KERNEL_SIZE), jnp.float32),
        "conv1_b": 0.1 * jax.random.normal(keys[1], (N_FILTERS,), jnp.float32),
        "conv2_w": 0.1 * jax.random.normal(keys[2], (N_FILTERS, N_FILTERS, KERNEL_SIZE), jnp.float32),
        "conv2_b": 0.1 * jax.random.normal(keys[3], (N_FILTERS,), jnp.float32),
        "fc1_w": 0.05 * jax.random.normal(keys[4], (FC_UNITS, N_FILTERS * LEN_SEQ), jnp.float32),
        "fc1_b": 0.05 * jax.random.normal(keys[5], (FC_UNITS,), jnp.float32),
        "fc2_w": 0.05 * jax.random.normal(keys[6], (FC_UNITS, FC_UNITS), jnp.float32),
        "fc2_b": 0.05 * jax.random.normal(keys[7], (FC_UNITS,), jnp.float32),
        "out_w": 0.05 * jax.random.normal(keys[8], (1, FC_UNITS), jnp.float32),
        "out_b": 0.05 * jax.random.normal(keys[9], (1,), jnp.float32),
    }
    x = jax.random.normal(keys[10], (BATCH, 4, LEN_SEQ), jnp.float32)

    kparams = prepare_params(params)          # hoisted out of the per-call path
    fwd = jax.jit(encas12a_forward)

    out = jax.block_until_ready(fwd(x, kparams))
    ref = jax.block_until_ready(encas12a_reference(x, params))

    assert out.shape == (BATCH, 1), out.shape
    # bf16 MXU operands with f32 accumulation -> looser tolerance than a pure-f32 path.
    np.testing.assert_allclose(np.asarray(out), np.asarray(ref), rtol=2e-2, atol=5e-3)
    print("KERNEL_OK")
</pallas_src>

<mosaic_0001>
module attributes {stable_mosaic.version = 11 : i64} {
  func.func @_encas12a_kernel(%arg0: i32, %arg1: memref<8x64xbf16, #tpu.memory_space<vmem>>, %arg2: memref<64x512xbf16, #tpu.memory_space<vmem>>, %arg3: memref<1x512xf32, #tpu.memory_space<vmem>>, %arg4: memref<512x512xbf16, #tpu.memory_space<vmem>>, %arg5: memref<1x512xf32, #tpu.memory_space<vmem>>, %arg6: memref<512x32xbf16, #tpu.memory_space<vmem>>, %arg7: memref<1x32xf32, #tpu.memory_space<vmem>>, %arg8: memref<32x32xbf16, #tpu.memory_space<vmem>>, %arg9: memref<1x32xf32, #tpu.memory_space<vmem>>, %arg10: memref<8x32xbf16, #tpu.memory_space<vmem>>, %arg11: memref<1x1xf32, #tpu.memory_space<vmem>>, %arg12: memref<1x1x8xf32, #tpu.memory_space<vmem>>) attributes {dimension_semantics = [#tpu.dimension_semantics<parallel>], iteration_bounds = array<i64: 1>, scalar_prefetch = 0 : i64, scratch_operands = 0 : i64, tpu.core_type = #tpu.core_type<tc>, window_params = [{transform_indices = @transform_0, window_bounds = array<i64: 8, 64>}, {pipeline_mode = #tpu.pipeline_mode<synchronous>, transform_indices = @transform_1, window_bounds = array<i64: 64, 512>}, {pipeline_mode = #tpu.pipeline_mode<synchronous>, transform_indices = @transform_2, window_bounds = array<i64: 1, 512>}, {pipeline_mode = #tpu.pipeline_mode<synchronous>, transform_indices = @transform_3, window_bounds = array<i64: 512, 512>}, {pipeline_mode = #tpu.pipeline_mode<synchronous>, transform_indices = @transform_4, window_bounds = array<i64: 1, 512>}, {pipeline_mode = #tpu.pipeline_mode<synchronous>, transform_indices = @transform_5, window_bounds = array<i64: 512, 32>}, {pipeline_mode = #tpu.pipeline_mode<synchronous>, transform_indices = @transform_6, window_bounds = array<i64: 1, 32>}, {pipeline_mode = #tpu.pipeline_mode<synchronous>, transform_indices = @transform_7, window_bounds = array<i64: 32, 32>}, {pipeline_mode = #tpu.pipeline_mode<synchronous>, transform_indices = @transform_8, window_bounds = array<i64: 1, 32>}, {pipeline_mode = #tpu.pipeline_mode<synchronous>, transform_indices = @transform_9, window_bounds = array<i64: 8, 32>}, {pipeline_mode = #tpu.pipeline_mode<synchronous>, transform_indices = @transform_10, window_bounds = array<i64: 1, 1>}, {transform_indices = @transform_11, window_bounds = array<i64: 1, 1, 8>}]} {
    %c0 = arith.constant 0 : index
    %c0_0 = arith.constant 0 : index
    %0 = vector.load %arg1[%c0, %c0_0] : memref<8x64xbf16, #tpu.memory_space<vmem>>, vector<8x64xbf16>
    %c0_1 = arith.constant 0 : index
    %c0_2 = arith.constant 0 : index
    %1 = vector.load %arg2[%c0_1, %c0_2] : memref<64x512xbf16, #tpu.memory_space<vmem>>, vector<64x512xbf16>
    %cst = arith.constant dense<0.000000e+00> : vector<8x512xf32>
    %2 = tpu.matmul %0, %1, %cst {dimension_numbers = #tpu.dot_dimension_numbers<[1], [0], [0], [1], [0, 0, 1, 1], [], []>} : vector<8x64xbf16>, vector<64x512xbf16>, vector<8x512xf32> -> vector<8x512xf32>
    %c0_3 = arith.constant 0 : index
    %c0_4 = arith.constant 0 : index
    %3 = vector.load %arg3[%c0_3, %c0_4] : memref<1x512xf32, #tpu.memory_space<vmem>>, vector<1x512xf32>
    %4 = vector.broadcast %3 : vector<1x512xf32> to vector<8x512xf32>
    %5 = arith.addf %2, %4 : vector<8x512xf32>
    %cst_5 = arith.constant 0.000000e+00 : f32
    %6 = vector.broadcast %cst_5 : f32 to vector<8x512xf32>
    %7 = arith.maximumf %5, %6 : vector<8x512xf32>
    %8 = arith.truncf %7 : vector<8x512xf32> to vector<8x512xbf16>
    %c0_6 = arith.constant 0 : index
    %c0_7 = arith.constant 0 : index
    %9 = vector.load %arg4[%c0_6, %c0_7] : memref<512x512xbf16, #tpu.memory_space<vmem>>, vector<512x512xbf16>
    %cst_8 = arith.constant dense<0.000000e+00> : vector<8x512xf32>
    %10 = tpu.matmul %8, %9, %cst_8 {dimension_numbers = #tpu.dot_dimension_numbers<[1], [0], [0], [1], [0, 0, 1, 1], [], []>} : vector<8x512xbf16>, vector<512x512xbf16>, vector<8x512xf32> -> vector<8x512xf32>
    %c0_9 = arith.constant 0 : index
    %c0_10 = arith.constant 0 : index
    %11 = vector.load %arg5[%c0_9, %c0_10] : memref<1x512xf32, #tpu.memory_space<vmem>>, vector<1x512xf32>
    %12 = vector.broadcast %11 : vector<1x512xf32> to vector<8x512xf32>
    %13 = arith.addf %10, %12 : vector<8x512xf32>
    %cst_11 = arith.constant 0.000000e+00 : f32
    %14 = vector.broadcast %cst_11 : f32 to vector<8x512xf32>
    %15 = arith.maximumf %13, %14 : vector<8x512xf32>
    %16 = arith.truncf %15 : vector<8x512xf32> to vector<8x512xbf16>
    %c0_12 = arith.constant 0 : index
    %c0_13 = arith.constant 0 : index
    %17 = vector.load %arg6[%c0_12, %c0_13] : memref<512x32xbf16, #tpu.memory_space<vmem>>, vector<512x32xbf16>
    %cst_14 = arith.constant dense<0.000000e+00> : vector<8x32xf32>
    %18 = tpu.matmul %16, %17, %cst_14 {dimension_numbers = #tpu.dot_dimension_numbers<[1], [0], [0], [1], [0, 0, 1, 1], [], []>} : vector<8x512xbf16>, vector<512x32xbf16>, vector<8x32xf32> -> vector<8x32xf32>
    %c0_15 = arith.constant 0 : index
    %c0_16 = arith.constant 0 : index
    %19 = vector.load %arg7[%c0_15, %c0_16] : memref<1x32xf32, #tpu.memory_space<vmem>>, vector<1x32xf32>
    %20 = vector.broadcast %19 : vector<1x32xf32> to vector<8x32xf32>
    %21 = arith.addf %18, %20 : vector<8x32xf32>
    %cst_17 = arith.constant 0.000000e+00 : f32
    %22 = vector.broadcast %cst_17 : f32 to vector<8x32xf32>
    %23 = arith.maximumf %21, %22 : vector<8x32xf32>
    %24 = arith.truncf %23 : vector<8x32xf32> to vector<8x32xbf16>
    %c0_18 = arith.constant 0 : index
    %c0_19 = arith.constant 0 : index
    %25 = vector.load %arg8[%c0_18, %c0_19] : memref<32x32xbf16, #tpu.memory_space<vmem>>, vector<32x32xbf16>
    %cst_20 = arith.constant dense<0.000000e+00> : vector<8x32xf32>
    %26 = tpu.matmul %24, %25, %cst_20 {dimension_numbers = #tpu.dot_dimension_numbers<[1], [0], [0], [1], [0, 0, 1, 1], [], []>} : vector<8x32xbf16>, vector<32x32xbf16>, vector<8x32xf32> -> vector<8x32xf32>
    %c0_21 = arith.constant 0 : index
    %c0_22 = arith.constant 0 : index
    %27 = vector.load %arg9[%c0_21, %c0_22] : memref<1x32xf32, #tpu.memory_space<vmem>>, vector<1x32xf32>
    %28 = vector.broadcast %27 : vector<1x32xf32> to vector<8x32xf32>
    %29 = arith.addf %26, %28 : vector<8x32xf32>
    %cst_23 = arith.constant 0.000000e+00 : f32
    %30 = vector.broadcast %cst_23 : f32 to vector<8x32xf32>
    %31 = arith.maximumf %29, %30 : vector<8x32xf32>
    %c0_24 = arith.constant 0 : index
    %c0_25 = arith.constant 0 : index
    %32 = vector.load %arg10[%c0_24, %c0_25] : memref<8x32xbf16, #tpu.memory_space<vmem>>, vector<8x32xbf16>
    %33 = arith.truncf %31 : vector<8x32xf32> to vector<8x32xbf16>
    %cst_26 = arith.constant dense<0.000000e+00> : vector<8x8xf32>
    %34 = tpu.matmul %32, %33, %cst_26 {dimension_numbers = #tpu.dot_dimension_numbers<[1], [1], [0], [0], [0, 0, 1, 0], [], []>} : vector<8x32xbf16>, vector<8x32xbf16>, vector<8x8xf32> -> vector<8x8xf32>
    %35 = vector.extract_strided_slice %34 {offsets = [0, 0], sizes = [1, 8], strides = [1, 1]} : vector<8x8xf32> to vector<1x8xf32>
    %c0_27 = arith.constant 0 : index
    %c0_28 = arith.constant 0 : index
    %36 = vector.load %arg11[%c0_27, %c0_28] : memref<1x1xf32, #tpu.memory_space<vmem>>, vector<1x1xf32>
    %37 = vector.broadcast %36 : vector<1x1xf32> to vector<1x8xf32>
    %38 = arith.addf %35, %37 : vector<1x8xf32>
    %39 = arith.negf %38 : vector<1x8xf32>
    %40 = math.exp %39 : vector<1x8xf32>
    %cst_29 = arith.constant 1.000000e+00 : f32
    %41 = vector.broadcast %cst_29 : f32 to vector<1x8xf32>
    %42 = arith.addf %41, %40 : vector<1x8xf32>
    %43 = arith.divf %41, %42 : vector<1x8xf32>
    %44 = vector.shape_cast %43 : vector<1x8xf32> to vector<1x1x8xf32>
    %c0_30 = arith.constant 0 : index
    %c0_31 = arith.constant 0 : index
    %c0_32 = arith.constant 0 : index
    %45 = vector.load %arg12[%c0_30, %c0_31, %c0_32] : memref<1x1x8xf32, #tpu.memory_space<vmem>>, vector<1x1x8xf32>
    tpu.vector_store %arg12[%c0_30, %c0_31, %c0_32], %44 {strides = array<i32>} : memref<1x1x8xf32, #tpu.memory_space<vmem>>, vector<1x1x8xf32>,
    return
  }
  func.func @transform_0(%arg0: i32) -> (i32, i32) {
    %c0_i32 = arith.constant 0 : i32
    %c0_i32_0 = arith.constant 0 : i32
    return %arg0, %c0_i32 : i32, i32
  }
  func.func @transform_1(%arg0: i32) -> (i32, i32) {
    %c0_i32 = arith.constant 0 : i32
    %c0_i32_0 = arith.constant 0 : i32
    %c0_i32_1 = arith.constant 0 : i32
    return %c0_i32, %c0_i32_0 : i32, i32
  }
  func.func @transform_2(%arg0: i32) -> (i32, i32) {
    %c0_i32 = arith.constant 0 : i32
    %c0_i32_0 = arith.constant 0 : i32
    %c0_i32_1 = arith.constant 0 : i32
    return %c0_i32, %c0_i32_0 : i32, i32
  }
  func.func @transform_3(%arg0: i32) -> (i32, i32) {
    %c0_i32 = arith.constant 0 : i32
    %c0_i32_0 = arith.constant 0 : i32
    %c0_i32_1 = arith.constant 0 : i32
    return %c0_i32, %c0_i32_0 : i32, i32
  }
  func.func @transform_4(%arg0: i32) -> (i32, i32) {
    %c0_i32 = arith.constant 0 : i32
    %c0_i32_0 = arith.constant 0 : i32
    %c0_i32_1 = arith.constant 0 : i32
    return %c0_i32, %c0_i32_0 : i32, i32
  }
  func.func @transform_5(%arg0: i32) -> (i32, i32) {
    %c0_i32 = arith.constant 0 : i32
    %c0_i32_0 = arith.constant 0 : i32
    %c0_i32_1 = arith.constant 0 : i32
    return %c0_i32, %c0_i32_0 : i32, i32
  }
  func.func @transform_6(%arg0: i32) -> (i32, i32) {
    %c0_i32 = arith.constant 0 : i32
    %c0_i32_0 = arith.constant 0 : i32
    %c0_i32_1 = arith.constant 0 : i32
    return %c0_i32, %c0_i32_0 : i32, i32
  }
  func.func @transform_7(%arg0: i32) -> (i32, i32) {
    %c0_i32 = arith.constant 0 : i32
    %c0_i32_0 = arith.constant 0 : i32
    %c0_i32_1 = arith.constant 0 : i32
    return %c0_i32, %c0_i32_0 : i32, i32
  }
  func.func @transform_8(%arg0: i32) -> (i32, i32) {
    %c0_i32 = arith.constant 0 : i32
    %c0_i32_0 = arith.constant 0 : i32
    %c0_i32_1 = arith.constant 0 : i32
    return %c0_i32, %c0_i32_0 : i32, i32
  }
  func.func @transform_9(%arg0: i32) -> (i32, i32) {
    %c0_i32 = arith.constant 0 : i32
    %c0_i32_0 = arith.constant 0 : i32
    %c0_i32_1 = arith.constant 0 : i32
    return %c0_i32, %c0_i32_0 : i32, i32
  }
  func.func @transform_10(%arg0: i32) -> (i32, i32) {
    %c0_i32 = arith.constant 0 : i32
    %c0_i32_0 = arith.constant 0 : i32
    %c0_i32_1 = arith.constant 0 : i32
    return %c0_i32, %c0_i32_0 : i32, i32
  }
  func.func @transform_11(%arg0: i32) -> (i32, i32, i32) {
    %c0_i32 = arith.constant 0 : i32
    %c0_i32_0 = arith.constant 0 : i32
    %c0_i32_1 = arith.constant 0 : i32
    return %arg0, %c0_i32, %c0_i32_0 : i32, i32, i32
  }
}

</mosaic_0001>

<llo_original>
// kernel: encas12a_forward.1
$region0: #{encas12a_forward.1}
  #allocation0 [shape = 'u32[]', space=smem, size = 0x4, offset = 0x4, fixed_abs, tag = 'smem constant byte address 0x4 - core index']
  #allocation1 [shape = 'u32[144,128]{1,0:T(1,128)}', space=vmem, size = 0x12000, scoped, tag = 'internal scratch']
  #allocation2 [shape = 'f32[1,1]{1,0:T(1,128)S(1)}', space=vmem, size = 0x200, scoped, tag = 'scoped memory for encas12a_forward.1']
  %s0 = inlined_call_operand.vmem [shape: bf16[8,64], index: 0, kind: input, shape index: {}]
  %s1 = inlined_call_operand.vmem [shape: bf16[64,512], index: 1, kind: input, shape index: {}]
  %s2 = inlined_call_operand.vmem [shape: f32[1,512], index: 2, kind: input, shape index: {}]
  %s3 = inlined_call_operand.hbm [shape: bf16[512,512], index: 3, kind: input, shape index: {}]
  %s4 = inlined_call_operand.vmem [shape: f32[1,512], index: 4, kind: input, shape index: {}]
  %s5 = inlined_call_operand.vmem [shape: bf16[512,32], index: 5, kind: input, shape index: {}]
  %s6 = inlined_call_operand.vmem [shape: f32[1,32], index: 6, kind: input, shape index: {}]
  %s7 = inlined_call_operand.vmem [shape: bf16[32,32], index: 7, kind: input, shape index: {}]
  %s8 = inlined_call_operand.vmem [shape: f32[1,32], index: 8, kind: input, shape index: {}]
  %s9 = inlined_call_operand.vmem [shape: bf16[8,32], index: 9, kind: input, shape index: {}]
  %s10 = inlined_call_operand.<no memory space> [shape: f32[1,1], index: 10, kind: input, shape index: {}]
  %s11 = inlined_call_operand.vmem [shape: f32[1,1,8], index: 11, kind: output, shape index: {}]
  %s12 = sld [smem:[#allocation0]]
  $region58: #{encas12a_forward.1} parent=0
    _
  %s14 = ssub.s32 1, %s12
  %s15 = scalar_select 0, %s14, %s12
  %v16 = vstv %s10
  %17 = vst [vmem:[#allocation2] sm:$0x1] %v16
  $region1: #{encas12a_forward.1} parent=0
    #allocation3 [shape = 'u8[524288]{0}', space=vmem, size = 0x80000, scoped, tag = 'input window, operand 3, single buffered']
    #allocation4 [shape = 's32[1]{0}', space=sflag, size = 0x4, scoped, tag = 'scoped memory for encas12a_forward.1']
    %18 = vsyncpa [#allocation4], 0
    // Predicated region
    $region2: #{encas12a_forward.1} parent=1 // pred_check
      _
    $region3: #{encas12a_forward.1} parent=1 // pred_check_branch
      %20 = sbr.rel (0) target = $region5
    $region4: #{encas12a_forward.1} parent=1 // pred_region
      _
    $region5: #{encas12a_forward.1} parent=1 // pred_fallthru
      _
    // Predicated region
    $region6: #{encas12a_forward.1} parent=1 // pred_check
      _
    $region7: #{encas12a_forward.1} parent=1 // pred_check_branch
      %22 = sbr.rel (0) target = $region9
    $region8: #{encas12a_forward.1} parent=1 // pred_region
      _
    $region9: #{encas12a_forward.1} parent=1 // pred_fallthru
      _
    // Predicated region
    $region10: #{encas12a_forward.1} parent=1 // pred_check
      _
    $region11: #{encas12a_forward.1} parent=1 // pred_check_branch
      %24 = sbr.rel (0) target = $region13
    $region12: #{encas12a_forward.1} parent=1 // pred_region
      _
    $region13: #{encas12a_forward.1} parent=1 // pred_fallthru
      _
    // Predicated region
    $region14: #{encas12a_forward.1} parent=1 // pred_check
      _
    $region15: #{encas12a_forward.1} parent=1 // pred_check_branch
      %26 = sbr.rel (0) target = $region17
    $region16: #{encas12a_forward.1} parent=1 // pred_region
      %s28 = ssub.s32 16384, 16384
      %29 = vsyncadd [#allocation4], %s28
      %s30 = sshll.u32 [#allocation3], 4
      %s31 = int_to_ptr.vmem [resolvable:$true] %s30
      %36 = dma.hbm_to_vmem [thread:$0]  %s3, 16384, %s31, [#allocation4], 256, 256, 16
    $region17: #{encas12a_forward.1} parent=1 // pred_fallthru
      _
    // Predicated region
    $region18: #{encas12a_forward.1} parent=1 // pred_check
      _
    $region19: #{encas12a_forward.1} parent=1 // pred_check_branch
      %38 = sbr.rel (0) target = $region21
    $region20: #{encas12a_forward.1} parent=1 // pred_region
      _
    $region21: #{encas12a_forward.1} parent=1 // pred_fallthru
      _
    // Predicated region
    $region22: #{encas12a_forward.1} parent=1 // pred_check
      _
    $region23: #{encas12a_forward.1} parent=1 // pred_check_branch
      %40 = sbr.rel (0) target = $region25
    $region24: #{encas12a_forward.1} parent=1 // pred_region
      _
    $region25: #{encas12a_forward.1} parent=1 // pred_fallthru
      _
    // Predicated region
    $region26: #{encas12a_forward.1} parent=1 // pred_check
      _
    $region27: #{encas12a_forward.1} parent=1 // pred_check_branch
      %42 = sbr.rel (0) target = $region29
    $region28: #{encas12a_forward.1} parent=1 // pred_region
      _
    $region29: #{encas12a_forward.1} parent=1 // pred_fallthru
      _
    // Predicated region
    $region30: #{encas12a_forward.1} parent=1 // pred_check
      _
    $region31: #{encas12a_forward.1} parent=1 // pred_check_branch
      %44 = sbr.rel (0) target = $region33
    $region32: #{encas12a_forward.1} parent=1 // pred_region
      _
    $region33: #{encas12a_forward.1} parent=1 // pred_fallthru
      _
    // Predicated region
    $region34: #{encas12a_forward.1} parent=1 // pred_check
      _
    $region35: #{encas12a_forward.1} parent=1 // pred_check_branch
      %46 = sbr.rel (0) target = $region37
    $region36: #{encas12a_forward.1} parent=1 // pred_region
      _
    $region37: #{encas12a_forward.1} parent=1 // pred_fallthru
      _
    // Predicated region
    $region38: #{encas12a_forward.1} parent=1 // pred_check
      _
    $region39: #{encas12a_forward.1} parent=1 // pred_check_branch
      %48 = sbr.rel (0) target = $region41
    $region40: #{encas12a_forward.1} parent=1 // pred_region
      _
    $region41: #{encas12a_forward.1} parent=1 // pred_fallthru
      _
    // Predicated region
    $region42: #{encas12a_forward.1} parent=1 // pred_check
      _
    $region43: #{encas12a_forward.1} parent=1 // pred_check_branch
      %50 = sbr.rel (0) target = $region45
    $region44: #{encas12a_forward.1} parent=1 // pred_region
      _
    $region45: #{encas12a_forward.1} parent=1 // pred_fallthru
      _
    // Predicated region
    $region46: #{encas12a_forward.1} parent=1 // pred_check
      _
    $region47: #{encas12a_forward.1} parent=1 // pred_check_branch
      %52 = sbr.rel (0) target = $region49
    $region48: #{encas12a_forward.1} parent=1 // pred_region
      %53 = dma.done [#allocation4], 16384
    $region49: #{encas12a_forward.1} parent=1 // pred_fallthru
      _
    %v55 = vld [vmem:[%s0] sm:$0xf]
    %v56 = vld [vmem:[%s1] sm:$0xff]
    %v57 = vld [vmem:[%s1 + $0x8] sm:$0xff]
    %v58 = vld [vmem:[%s1 + $0x10] sm:$0xff]
    %v59 = vld [vmem:[%s1 + $0x18] sm:$0xff]
    %v60 = vld [vmem:[%s1 + $0x20] sm:$0xff]
    %v61 = vld [vmem:[%s1 + $0x28] sm:$0xff]
    %v62 = vld [vmem:[%s1 + $0x30] sm:$0xff]
    %v63 = vld [vmem:[%s1 + $0x38] sm:$0xff]
    %v64 = vld [vmem:[%s1 + $0x40] sm:$0xff]
    %v65 = vld [vmem:[%s1 + $0x48] sm:$0xff]
    %v66 = vld [vmem:[%s1 + $0x50] sm:$0xff]
    %v67 = vld [vmem:[%s1 + $0x58] sm:$0xff]
    %v68 = vld [vmem:[%s1 + $0x60] sm:$0xff]
    %v69 = vld [vmem:[%s1 + $0x68] sm:$0xff]
    %v70 = vld [vmem:[%s1 + $0x70] sm:$0xff]
    %v71 = vld [vmem:[%s1 + $0x78] sm:$0xff]
    %v72 = vld [vmem:[%s2] sm:$0xf]
    %v74 = vlaneseq
    %v75 = vshrl.u32 %v74, 7
    %v76 = vsub.s32 0, %v75
    %v77 = vrot.slane %v72, %v76
    %v78 = vlaneseq
    %v79 = vshrl.u32 %v78, 7
    %v80 = vsub.s32 1, %v79
    %v81 = vrot.slane %v72, %v80
    %v82 = vlaneseq
    %v83 = vshrl.u32 %v82, 7
    %v84 = vsub.s32 2, %v83
    %v85 = vrot.slane %v72, %v84
    %v86 = vlaneseq
    %v87 = vshrl.u32 %v86, 7
    %v88 = vsub.s32 3, %v87
    %v89 = vrot.slane %v72, %v88
    %v110 = vunpack.c.l.b16 %v56
    %v111 = vunpack.c.h.b16 %v56
    %v112 = vunpack.c.l.b16 %v57
    %v113 = vunpack.c.h.b16 %v57
    %v114 = vunpack.c.l.b16 %v58
    %v115 = vunpack.c.h.b16 %v58
    %v116 = vunpack.c.l.b16 %v59
    %v117 = vunpack.c.h.b16 %v59
    %v118 = vunpack.c.l.b16 %v60
    %v119 = vunpack.c.h.b16 %v60
    %v120 = vunpack.c.l.b16 %v61
    %v121 = vunpack.c.h.b16 %v61
    %v122 = vunpack.c.l.b16 %v62
    %v123 = vunpack.c.h.b16 %v62
    %v124 = vunpack.c.l.b16 %v63
    %v125 = vunpack.c.h.b16 %v63
    %v126 = vunpack.c.l.b16 %v64
    %v127 = vunpack.c.h.b16 %v64
    %v128 = vunpack.c.l.b16 %v65
    %v129 = vunpack.c.h.b16 %v65
    %v130 = vunpack.c.l.b16 %v66
    %v131 = vunpack.c.h.b16 %v66
    %v132 = vunpack.c.l.b16 %v67
    %v133 = vunpack.c.h.b16 %v67
    %v134 = vunpack.c.l.b16 %v68
    %v135 = vunpack.c.h.b16 %v68
    %v136 = vunpack.c.l.b16 %v69
    %v137 = vunpack.c.h.b16 %v69
    %v138 = vunpack.c.l.b16 %v70
    %v139 = vunpack.c.h.b16 %v70
    %v140 = vunpack.c.l.b16 %v71
    %v141 = vunpack.c.h.b16 %v71
    %v142 = vpack.c.b16 %v114, %v110
    %v143 = vpack.c.b16 %v115, %v111
    %v144 = vpack.c.b16 %v116, %v112
    %v145 = vpack.c.b16 %v117, %v113
    %v146 = vpack.c.b16 %v122, %v118
    %v147 = vpack.c.b16 %v123, %v119
    %v148 = vpack.c.b16 %v124, %v120
    %v149 = vpack.c.b16 %v125, %v121
    %v150 = vpack.c.b16 %v130, %v126
    %v151 = vpack.c.b16 %v131, %v127
    %v152 = vpack.c.b16 %v132, %v128
    %v153 = vpack.c.b16 %v133, %v129
    %v154 = vpack.c.b16 %v138, %v134
    %v155 = vpack.c.b16 %v139, %v135
    %v156 = vpack.c.b16 %v140, %v136
    %v157 = vpack.c.b16 %v141, %v137
    %vm174 = vcmask 523264
    %v176 = vsel %vm174, %v55, 0
    %178 = vmatprep.subr.bf16.mxu0 %v143
    %179 = vmatpush1.bf16.msra.mxu0 %v142
    %180 = vmatprep.subr.bf16.mxu0 %v147
    %181 = vmatpush1.bf16.msra.mxu0 %v146
    %182 = vmatprep.subr.bf16.mxu0 %v151
    %183 = vmatpush1.bf16.msra.mxu0 %v150
    %184 = vmatprep.subr.bf16.mxu0 %v155
    %185 = vmatpush1.bf16.msra.mxu0 %v154
    %186 = vmatprep.subr.bf16.mxu0 0
    %187 = vmatpush1.bf16.msra.mxu0 0
    %188 = vmatprep.subr.bf16.mxu0 0
    %189 = vmatpush1.bf16.msra.mxu0 0
    %190 = vmatprep.subr.bf16.mxu0 0
    %191 = vmatpush1.bf16.msra.mxu0 0
    %192 = vmatprep.subr.bf16.mxu0 0
    %193 = vmatpush1.bf16.msra.mxu0 0
    %194 = vmatprep.subr.bf16.mxu0 0
    %195 = vmatpush1.bf16.msra.mxu0 0
    %196 = vmatprep.subr.bf16.mxu0 0
    %197 = vmatpush1.bf16.msra.mxu0 0
    %198 = vmatprep.subr.bf16.mxu0 0
    %199 = vmatpush1.bf16.msra.mxu0 0
    %200 = vmatprep.subr.bf16.mxu0 0
    %201 = vmatpush1.bf16.msra.mxu0 0
    %202 = vmatprep.subr.bf16.mxu0 0
    %203 = vmatpush1.bf16.msra.mxu0 0
    %204 = vmatprep.subr.bf16.mxu0 0
    %205 = vmatpush1.bf16.msra.mxu0 0
    %206 = vmatprep.subr.bf16.mxu0 0
    %207 = vmatpush1.bf16.msra.mxu0 0
    %208 = vmatprep.subr.bf16.mxu0 0
    %209 = vmatpush1.bf16.msra.mxu0 0
    %210 = vmatprep.mubr.bf16.mxu0 0
    %211 = vmatmul.mubr.bf16.gmra.mrb[0].mxu0 %v176
    %v212 = vpop.f32.mrb[0].mxu0
    %v213 = vadd.f32 %v77, %v212
    %v214 = vpop.f32.mrb[0].mxu0
    %v215 = vadd.f32 %v81, %v214
    %v216 = vpop.f32.mrb[0].mxu0
    %v217 = vpop.f32.mrb[0].mxu0
    %218 = vdwg.mxu0
    %219 = vmatprep.subr.bf16.mxu0 %v145
    %220 = vmatpush1.bf16.msra.mxu0 %v144
    %221 = vmatprep.subr.bf16.mxu0 %v149
    %222 = vmatpush1.bf16.msra.mxu0 %v148
    %223 = vmatprep.subr.bf16.mxu0 %v153
    %224 = vmatpush1.bf16.msra.mxu0 %v152
    %225 = vmatprep.subr.bf16.mxu0 %v157
    %226 = vmatpush1.bf16.msra.mxu0 %v156
    %227 = vmatprep.subr.bf16.mxu0 0
    %228 = vmatpush1.bf16.msra.mxu0 0
    %229 = vmatprep.subr.bf16.mxu0 0
    %230 = vmatpush1.bf16.msra.mxu0 0
    %231 = vmatprep.subr.bf16.mxu0 0
    %232 = vmatpush1.bf16.msra.mxu0 0
    %233 = vmatprep.subr.bf16.mxu0 0
    %234 = vmatpush1.bf16.msra.mxu0 0
    %235 = vmatprep.subr.bf16.mxu0 0
    %236 = vmatpush1.bf16.msra.mxu0 0
    %237 = vmatprep.subr.bf16.mxu0 0
    %238 = vmatpush1.bf16.msra.mxu0 0
    %239 = vmatprep.subr.bf16.mxu0 0
    %240 = vmatpush1.bf16.msra.mxu0 0
    %241 = vmatprep.subr.bf16.mxu0 0
    %242 = vmatpush1.bf16.msra.mxu0 0
    %243 = vmatprep.subr.bf16.mxu0 0
    %244 = vmatpush1.bf16.msra.mxu0 0
    %245 = vmatprep.subr.bf16.mxu0 0
    %246 = vmatpush1.bf16.msra.mxu0 0
    %247 = vmatprep.subr.bf16.mxu0 0
    %248 = vmatpush1.bf16.msra.mxu0 0
    %249 = vmatprep.subr.bf16.mxu0 0
    %250 = vmatpush1.bf16.msra.mxu0 0
    %251 = vmatprep.mubr.bf16.mxu0 0
    %252 = vmatmul.mubr.bf16.gmra.mrb[0].mxu0 %v176
    %v253 = vpop.f32.mrb[0].mxu0
    %v254 = vadd.f32 %v85, %v253
    %v255 = vpop.f32.mrb[0].mxu0
    %v256 = vadd.f32 %v89, %v255
    %v257 = vpop.f32.mrb[0].mxu0
    %v258 = vpop.f32.mrb[0].mxu0
    %259 = vdwg.mxu0
    %v260 = vmax.f32 %v213, 0.0
    %v261 = vmax.f32 %v215, 0.0
    %v262 = vmax.f32 %v254, 0.0
    %v263 = vmax.f32 %v256, 0.0
    %v264 = vpack.c.bf16 %v260, %v260
    %v265 = vpack.c.bf16 %v261, %v261
    %v266 = vpack.c.bf16 %v262, %v262
    %v267 = vpack.c.bf16 %v263, %v263
    %v268 = vld [vmem:[#allocation3] sm:$0xff]
    %v269 = vld [vmem:[#allocation3 + $0x8] sm:$0xff]
    %v270 = vld [vmem:[#allocation3 + $0x10] sm:$0xff]
    %v271 = vld [vmem:[#allocation3 + $0x18] sm:$0xff]
    %v272 = vld [vmem:[#allocation3 + $0x20] sm:$0xff]
    %v273 = vld [vmem:[#allocation3 + $0x28] sm:$0xff]
    %v274 = vld [vmem:[#allocation3 + $0x30] sm:$0xff]
    %v275 = vld [vmem:[#allocation3 + $0x38] sm:$0xff]
    %v276 = vld [vmem:[#allocation3 + $0x40] sm:$0xff]
    %v277 = vld [vmem:[#allocation3 + $0x48] sm:$0xff]
    %v278 = vld [vmem:[#allocation3 + $0x50] sm:$0xff]
    %v279 = vld [vmem:[#allocation3 + $0x58] sm:$0xff]
    %v280 = vld [vmem:[#allocation3 + $0x60] sm:$0xff]
    %v281 = vld [vmem:[#allocation3 + $0x68] sm:$0xff]
    %v282 = vld [vmem:[#allocation3 + $0x70] sm:$0xff]
    %v283 = vld [vmem:[#allocation3 + $0x78] sm:$0xff]
    %v284 = vld [vmem:[#allocation3 + $0x80] sm:$0xff]
    %v285 = vld [vmem:[#allocation3 + $0x88] sm:$0xff]
    %v286 = vld [vmem:[#allocation3 + $0x90] sm:$0xff]
    %v287 = vld [vmem:[#allocation3 + $0x98] sm:$0xff]
    %v288 = vld [vmem:[#allocation3 + $0xa0] sm:$0xff]
    %v289 = vld [vmem:[#allocation3 + $0xa8] sm:$0xff]
    %v290 = vld [vmem:[#allocation3 + $0xb0] sm:$0xff]
    %v291 = vld [vmem:[#allocation3 + $0xb8] sm:$0xff]
    %v292 = vld [vmem:[#allocation3 + $0xc0] sm:$0xff]
    %v293 = vld [vmem:[#allocation3 + $0xc8] sm:$0xff]
    %v294 = vld [vmem:[#allocation3 + $0xd0] sm:$0xff]
    %v295 = vld [vmem:[#allocation3 + $0xd8] sm:$0xff]
    %v296 = vld [vmem:[#allocation3 + $0xe0] sm:$0xff]
    %v297 = vld [vmem:[#allocation3 + $0xe8] sm:$0xff]
    %v298 = vld [vmem:[#allocation3 + $0xf0] sm:$0xff]
    %v299 = vld [vmem:[#allocation3 + $0xf8] sm:$0xff]
    %v300 = vld [vmem:[#allocation3 + $0x100] sm:$0xff]
    %v301 = vld [vmem:[#allocation3 + $0x108] sm:$0xff]
    %v302 = vld [vmem:[#allocation3 + $0x110] sm:$0xff]
    %v303 = vld [vmem:[#allocation3 + $0x118] sm:$0xff]
    %v304 = vld [vmem:[#allocation3 + $0x120] sm:$0xff]
    %v305 = vld [vmem:[#allocation3 + $0x128] sm:$0xff]
    %v306 = vld [vmem:[#allocation3 + $0x130] sm:$0xff]
    %v307 = vld [vmem:[#allocation3 + $0x138] sm:$0xff]
    %v308 = vld [vmem:[#allocation3 + $0x140] sm:$0xff]
    %v309 = vld [vmem:[#allocation3 + $0x148] sm:$0xff]
    %v310 = vld [vmem:[#allocation3 + $0x150] sm:$0xff]
    %v311 = vld [vmem:[#allocation3 + $0x158] sm:$0xff]
    %v312 = vld [vmem:[#allocation3 + $0x160] sm:$0xff]
    %v313 = vld [vmem:[#allocation3 + $0x168] sm:$0xff]
    %v314 = vld [vmem:[#allocation3 + $0x170] sm:$0xff]
    %v315 = vld [vmem:[#allocation3 + $0x178] sm:$0xff]
    %v316 = vld [vmem:[#allocation3 + $0x180] sm:$0xff]
    %v317 = vld [vmem:[#allocation3 + $0x188] sm:$0xff]
    %v318 = vld [vmem:[#allocation3 + $0x190] sm:$0xff]
    %v319 = vld [vmem:[#allocation3 + $0x198] sm:$0xff]
    %v320 = vld [vmem:[#allocation3 + $0x1a0] sm:$0xff]
    %v321 = vld [vmem:[#allocation3 + $0x1a8] sm:$0xff]
    %v322 = vld [vmem:[#allocation3 + $0x1b0] sm:$0xff]
    %v323 = vld [vmem:[#allocation3 + $0x1b8] sm:$0xff]
    %v324 = vld [vmem:[#allocation3 + $0x1c0] sm:$0xff]
    %v325 = vld [vmem:[#allocation3 + $0x1c8] sm:$0xff]
    %v326 = vld [vmem:[#allocation3 + $0x1d0] sm:$0xff]
    %v327 = vld [vmem:[#allocation3 + $0x1d8] sm:$0xff]
    %v328 = vld [vmem:[#allocation3 + $0x1e0] sm:$0xff]
    %v329 = vld [vmem:[#allocation3 + $0x1e8] sm:$0xff]
    %v330 = vld [vmem:[#allocation3 + $0x1f0] sm:$0xff]
    %v331 = vld [vmem:[#allocation3 + $0x1f8] sm:$0xff]
    %v332 = vld [vmem:[#allocation3 + $0x200] sm:$0xff]
    %v333 = vld [vmem:[#allocation3 + $0x208] sm:$0xff]
    %v334 = vld [vmem:[#allocation3 + $0x210] sm:$0xff]
    %v335 = vld [vmem:[#allocation3 + $0x218] sm:$0xff]
    %v336 = vld [vmem:[#allocation3 + $0x220] sm:$0xff]
    %v337 = vld [vmem:[#allocation3 + $0x228] sm:$0xff]
    %v338 = vld [vmem:[#allocation3 + $0x230] sm:$0xff]
    %v339 = vld [vmem:[#allocation3 + $0x238] sm:$0xff]
    %v340 = vld [vmem:[#allocation3 + $0x240] sm:$0xff]
    %v341 = vld [vmem:[#allocation3 + $0x248] sm:$0xff]
    %v342 = vld [vmem:[#allocation3 + $0x250] sm:$0xff]
    %v343 = vld [vmem:[#allocation3 + $0x258] sm:$0xff]
    %v344 = vld [vmem:[#allocation3 + $0x260] sm:$0xff]
    %v345 = vld [vmem:[#allocation3 + $0x268] sm:$0xff]
    %v346 = vld [vmem:[#allocation3 + $0x270] sm:$0xff]
    %v347 = vld [vmem:[#allocation3 + $0x278] sm:$0xff]
    %v348 = vld [vmem:[#allocation3 + $0x280] sm:$0xff]
    %v349 = vld [vmem:[#allocation3 + $0x288] sm:$0xff]
    %v350 = vld [vmem:[#allocation3 + $0x290] sm:$0xff]
    %v351 = vld [vmem:[#allocation3 + $0x298] sm:$0xff]
    %v352 = vld [vmem:[#allocation3 + $0x2a0] sm:$0xff]
    %v353 = vld [vmem:[#allocation3 + $0x2a8] sm:$0xff]
    %v354 = vld [vmem:[#allocation3 + $0x2b0] sm:$0xff]
    %v355 = vld [vmem:[#allocation3 + $0x2b8] sm:$0xff]
    %v356 = vld [vmem:[#allocation3 + $0x2c0] sm:$0xff]
    %v357 = vld [vmem:[#allocation3 + $0x2c8] sm:$0xff]
    %v358 = vld [vmem:[#allocation3 + $0x2d0] sm:$0xff]
    %v359 = vld [vmem:[#allocation3 + $0x2d8] sm:$0xff]
    %v360 = vld [vmem:[#allocation3 + $0x2e0] sm:$0xff]
    %v361 = vld [vmem:[#allocation3 + $0x2e8] sm:$0xff]
    %v362 = vld [vmem:[#allocation3 + $0x2f0] sm:$0xff]
    %v363 = vld [vmem:[#allocation3 + $0x2f8] sm:$0xff]
    %v364 = vld [vmem:[#allocation3 + $0x300] sm:$0xff]
    %v365 = vld [vmem:[#allocation3 + $0x308] sm:$0xff]
    %v366 = vld [vmem:[#allocation3 + $0x310] sm:$0xff]
    %v367 = vld [vmem:[#allocation3 + $0x318] sm:$0xff]
    %v368 = vld [vmem:[#allocation3 + $0x320] sm:$0xff]
    %v369 = vld [vmem:[#allocation3 + $0x328] sm:$0xff]
    %v370 = vld [vmem:[#allocation3 + $0x330] sm:$0xff]
    %v371 = vld [vmem:[#allocation3 + $0x338] sm:$0xff]
    %v372 = vld [vmem:[#allocation3 + $0x340] sm:$0xff]
    %v373 = vld [vmem:[#allocation3 + $0x348] sm:$0xff]
    %v374 = vld [vmem:[#allocation3 + $0x350] sm:$0xff]
    %v375 = vld [vmem:[#allocation3 + $0x358] sm:$0xff]
    %v376 = vld [vmem:[#allocation3 + $0x360] sm:$0xff]
    %v377 = vld [vmem:[#allocation3 + $0x368] sm:$0xff]
    %v378 = vld [vmem:[#allocation3 + $0x370] sm:$0xff]
    %v379 = vld [vmem:[#allocation3 + $0x378] sm:$0xff]
    %v380 = vld [vmem:[#allocation3 + $0x380] sm:$0xff]
    %v381 = vld [vmem:[#allocation3 + $0x388] sm:$0xff]
    %v382 = vld [vmem:[#allocation3 + $0x390] sm:$0xff]
    %v383 = vld [vmem:[#allocation3 + $0x398] sm:$0xff]
    %v384 = vld [vmem:[#allocation3 + $0x3a0] sm:$0xff]
    %v385 = vld [vmem:[#allocation3 + $0x3a8] sm:$0xff]
    %v386 = vld [vmem:[#allocation3 + $0x3b0] sm:$0xff]
    %v387 = vld [vmem:[#allocation3 + $0x3b8] sm:$0xff]
    %v388 = vld [vmem:[#allocation3 + $0x3c0] sm:$0xff]
    %v389 = vld [vmem:[#allocation3 + $0x3c8] sm:$0xff]
    %v390 = vld [vmem:[#allocation3 + $0x3d0] sm:$0xff]
    %v391 = vld [vmem:[#allocation3 + $0x3d8] sm:$0xff]
    %v392 = vld [vmem:[#allocation3 + $0x3e0] sm:$0xff]
    %v393 = vld [vmem:[#allocation3 + $0x3e8] sm:$0xff]
    %v394 = vld [vmem:[#allocation3 + $0x3f0] sm:$0xff]
    %v395 = vld [vmem:[#allocation3 + $0x3f8] sm:$0xff]
    %v396 = vld [vmem:[%s4] sm:$0xf]
    %v398 = vlaneseq
    %v399 = vshrl.u32 %v398, 7
    %v400 = vsub.s32 0, %v399
    %v401 = vrot.slane %v396, %v400
    %v402 = vlaneseq
    %v403 = vshrl.u32 %v402, 7
    %v404 = vsub.s32 1, %v403
    %v405 = vrot.slane %v396, %v404
    %v406 = vlaneseq
    %v407 = vshrl.u32 %v406, 7
    %v408 = vsub.s32 2, %v407
    %v409 = vrot.slane %v396, %v408
    %v410 = vlaneseq
    %v411 = vshrl.u32 %v410, 7
    %v412 = vsub.s32 3, %v411
    %v413 = vrot.slane %v396, %v412
    %v546 = vunpack.c.l.b16 %v268
    %v547 = vunpack.c.h.b16 %v268
    %v548 = vunpack.c.l.b16 %v269
    %v549 = vunpack.c.h.b16 %v269
    %v550 = vunpack.c.l.b16 %v270
    %v551 = vunpack.c.h.b16 %v270
    %v552 = vunpack.c.l.b16 %v271
    %v553 = vunpack.c.h.b16 %v271
    %v554 = vunpack.c.l.b16 %v272
    %v555 = vunpack.c.h.b16 %v272
    %v556 = vunpack.c.l.b16 %v273
    %v557 = vunpack.c.h.b16 %v273
    %v558 = vunpack.c.l.b16 %v274
    %v559 = vunpack.c.h.b16 %v274
    %v560 = vunpack.c.l.b16 %v275
    %v561 = vunpack.c.h.b16 %v275
    %v562 = vunpack.c.l.b16 %v276
    %v563 = vunpack.c.h.b16 %v276
    %v564 = vunpack.c.l.b16 %v277
    %v565 = vunpack.c.h.b16 %v277
    %v566 = vunpack.c.l.b16 %v278
    %v567 = vunpack.c.h.b16 %v278
    %v568 = vunpack.c.l.b16 %v279
    %v569 = vunpack.c.h.b16 %v279
    %v570 = vunpack.c.l.b16 %v280
    %v571 = vunpack.c.h.b16 %v280
    %v572 = vunpack.c.l.b16 %v281
    %v573 = vunpack.c.h.b16 %v281
    %v574 = vunpack.c.l.b16 %v282
    %v575 = vunpack.c.h.b16 %v282
    %v576 = vunpack.c.l.b16 %v283
    %v577 = vunpack.c.h.b16 %v283
    %v578 = vunpack.c.l.b16 %v284
    %v579 = vunpack.c.h.b16 %v284
    %v580 = vunpack.c.l.b16 %v285
    %v581 = vunpack.c.h.b16 %v285
    %v582 = vunpack.c.l.b16 %v286
    %v583 = vunpack.c.h.b16 %v286
    %v584 = vunpack.c.l.b16 %v287
    %v585 = vunpack.c.h.b16 %v287
    %v586 = vunpack.c.l.b16 %v288
    %v587 = vunpack.c.h.b16 %v288
    %v588 = vunpack.c.l.b16 %v289
    %v589 = vunpack.c.h.b16 %v289
    %v590 = vunpack.c.l.b16 %v290
    %v591 = vunpack.c.h.b16 %v290
    %v592 = vunpack.c.l.b16 %v291
    %v593 = vunpack.c.h.b16 %v291
    %v594 = vunpack.c.l.b16 %v292
    %v595 = vunpack.c.h.b16 %v292
    %v596 = vunpack.c.l.b16 %v293
    %v597 = vunpack.c.h.b16 %v293
    %v598 = vunpack.c.l.b16 %v294
    %v599 = vunpack.c.h.b16 %v294
    %v600 = vunpack.c.l.b16 %v295
    %v601 = vunpack.c.h.b16 %v295
    %v602 = vunpack.c.l.b16 %v296
    %v603 = vunpack.c.h.b16 %v296
    %v604 = vunpack.c.l.b16 %v297
    %v605 = vunpack.c.h.b16 %v297
    %v606 = vunpack.c.l.b16 %v298
    %v607 = vunpack.c.h.b16 %v298
    %v608 = vunpack.c.l.b16 %v299
    %v609 = vunpack.c.h.b16 %v299
    %v610 = vunpack.c.l.b16 %v300
    %v611 = vunpack.c.h.b16 %v300
    %v612 = vunpack.c.l.b16 %v301
    %v613 = vunpack.c.h.b16 %v301
    %v614 = vunpack.c.l.b16 %v302
    %v615 = vunpack.c.h.b16 %v302
    %v616 = vunpack.c.l.b16 %v303
    %v617 = vunpack.c.h.b16 %v303
    %v618 = vunpack.c.l.b16 %v304
    %v619 = vunpack.c.h.b16 %v304
    %v620 = vunpack.c.l.b16 %v305
    %v621 = vunpack.c.h.b16 %v305
    %v622 = vunpack.c.l.b16 %v306
    %v623 = vunpack.c.h.b16 %v306
    %v624 = vunpack.c.l.b16 %v307
    %v625 = vunpack.c.h.b16 %v307
    %v626 = vunpack.c.l.b16 %v308
    %v627 = vunpack.c.h.b16 %v308
    %v628 = vunpack.c.l.b16 %v309
    %v629 = vunpack.c.h.b16 %v309
    %v630 = vunpack.c.l.b16 %v310
    %v631 = vunpack.c.h.b16 %v310
    %v632 = vunpack.c.l.b16 %v311
    %v633 = vunpack.c.h.b16 %v311
    %v634 = vunpack.c.l.b16 %v312
    %v635 = vunpack.c.h.b16 %v312
    %v636 = vunpack.c.l.b16 %v313
    %v637 = vunpack.c.h.b16 %v313
    %v638 = vunpack.c.l.b16 %v314
    %v639 = vunpack.c.h.b16 %v314
    %v640 = vunpack.c.l.b16 %v315
    %v641 = vunpack.c.h.b16 %v315
    %v642 = vunpack.c.l.b16 %v316
    %v643 = vunpack.c.h.b16 %v316
    %v644 = vunpack.c.l.b16 %v317
    %v645 = vunpack.c.h.b16 %v317
    %v646 = vunpack.c.l.b16 %v318
    %v647 = vunpack.c.h.b16 %v318
    %v648 = vunpack.c.l.b16 %v319
    %v649 = vunpack.c.h.b16 %v319
    %v650 = vunpack.c.l.b16 %v320
    %v651 = vunpack.c.h.b16 %v320
    %v652 = vunpack.c.l.b16 %v321
    %v653 = vunpack.c.h.b16 %v321
    %v654 = vunpack.c.l.b16 %v322
    %v655 = vunpack.c.h.b16 %v322
    %v656 = vunpack.c.l.b16 %v323
    %v657 = vunpack.c.h.b16 %v323
    %v658 = vunpack.c.l.b16 %v324
    %v659 = vunpack.c.h.b16 %v324
    %v660 = vunpack.c.l.b16 %v325
    %v661 = vunpack.c.h.b16 %v325
    %v662 = vunpack.c.l.b16 %v326
    %v663 = vunpack.c.h.b16 %v326
    %v664 = vunpack.c.l.b16 %v327
    %v665 = vunpack.c.h.b16 %v327
    %v666 = vunpack.c.l.b16 %v328
    %v667 = vunpack.c.h.b16 %v328
    %v668 = vunpack.c.l.b16 %v329
    %v669 = vunpack.c.h.b16 %v329
    %v670 = vunpack.c.l.b16 %v330
    %v671 = vunpack.c.h.b16 %v330
    %v672 = vunpack.c.l.b16 %v331
    %v673 = vunpack.c.h.b16 %v331
    %v674 = vunpack.c.l.b16 %v332
    %v675 = vunpack.c.h.b16 %v332
    %v676 = vunpack.c.l.b16 %v333
    %v677 = vunpack.c.h.b16 %v333
    %v678 = vunpack.c.l.b16 %v334
    %v679 = vunpack.c.h.b16 %v334
    %v680 = vunpack.c.l.b16 %v335
    %v681 = vunpack.c.h.b16 %v335
    %v682 = vunpack.c.l.b16 %v336
    %v683 = vunpack.c.h.b16 %v336
    %v684 = vunpack.c.l.b16 %v337
    %v685 = vunpack.c.h.b16 %v337
    %v686 = vunpack.c.l.b16 %v338
    %v687 = vunpack.c.h.b16 %v338
    %v688 = vunpack.c.l.b16 %v339
    %v689 = vunpack.c.h.b16 %v339
    %v690 = vunpack.c.l.b16 %v340
    %v691 = vunpack.c.h.b16 %v340
    %v692 = vunpack.c.l.b16 %v341
    %v693 = vunpack.c.h.b16 %v341
    %v694 = vunpack.c.l.b16 %v342
    %v695 = vunpack.c.h.b16 %v342
    %v696 = vunpack.c.l.b16 %v343
    %v697 = vunpack.c.h.b16 %v343
    %v698 = vunpack.c.l.b16 %v344
    %v699 = vunpack.c.h.b16 %v344
    %v700 = vunpack.c.l.b16 %v345
    %v701 = vunpack.c.h.b16 %v345
    %v702 = vunpack.c.l.b16 %v346
    %v703 = vunpack.c.h.b16 %v346
    %v704 = vunpack.c.l.b16 %v347
    %v705 = vunpack.c.h.b16 %v347
    %v706 = vunpack.c.l.b16 %v348
    %v707 = vunpack.c.h.b16 %v348
    %v708 = vunpack.c.l.b16 %v349
    %v709 = vunpack.c.h.b16 %v349
    %v710 = vunpack.c.l.b16 %v350
    %v711 = vunpack.c.h.b16 %v350
    %v712 = vunpack.c.l.b16 %v351
    %v713 = vunpack.c.h.b16 %v351
    %v714 = vunpack.c.l.b16 %v352
    %v715 = vunpack.c.h.b16 %v352
    %v716 = vunpack.c.l.b16 %v353
    %v717 = vunpack.c.h.b16 %v353
    %v718 = vunpack.c.l.b16 %v354
    %v719 = vunpack.c.h.b16 %v354
    %v720 = vunpack.c.l.b16 %v355
    %v721 = vunpack.c.h.b16 %v355
    %v722 = vunpack.c.l.b16 %v356
    %v723 = vunpack.c.h.b16 %v356
    %v724 = vunpack.c.l.b16 %v357
    %v725 = vunpack.c.h.b16 %v357
    %v726 = vunpack.c.l.b16 %v358
    %v727 = vunpack.c.h.b16 %v358
    %v728 = vunpack.c.l.b16 %v359
    %v729 = vunpack.c.h.b16 %v359
    %v730 = vunpack.c.l.b16 %v360
    %v731 = vunpack.c.h.b16 %v360
    %v732 = vunpack.c.l.b16 %v361
    %v733 = vunpack.c.h.b16 %v361
    %v734 = vunpack.c.l.b16 %v362
    %v735 = vunpack.c.h.b16 %v362
    %v736 = vunpack.c.l.b16 %v363
    %v737 = vunpack.c.h.b16 %v363
    %v738 = vunpack.c.l.b16 %v364
    %v739 = vunpack.c.h.b16 %v364
    %v740 = vunpack.c.l.b16 %v365
    %v741 = vunpack.c.h.b16 %v365
    %v742 = vunpack.c.l.b16 %v366
    %v743 = vunpack.c.h.b16 %v366
    %v744 = vunpack.c.l.b16 %v367
    %v745 = vunpack.c.h.b16 %v367
    %v746 = vunpack.c.l.b16 %v368
    %v747 = vunpack.c.h.b16 %v368
    %v748 = vunpack.c.l.b16 %v369
    %v749 = vunpack.c.h.b16 %v369
    %v750 = vunpack.c.l.b16 %v370
    %v751 = vunpack.c.h.b16 %v370
    %v752 = vunpack.c.l.b16 %v371
    %v753 = vunpack.c.h.b16 %v371
    %v754 = vunpack.c.l.b16 %v372
    %v755 = vunpack.c.h.b16 %v372
    %v756 = vunpack.c.l.b16 %v373
    %v757 = vunpack.c.h.b16 %v373
    %v758 = vunpack.c.l.b16 %v374
    %v759 = vunpack.c.h.b16 %v374
    %v760 = vunpack.c.l.b16 %v375
    %v761 = vunpack.c.h.b16 %v375
    %v762 = vunpack.c.l.b16 %v376
    %v763 = vunpack.c.h.b16 %v376
    %v764 = vunpack.c.l.b16 %v377
    %v765 = vunpack.c.h.b16 %v377
    %v766 = vunpack.c.l.b16 %v378
    %v767 = vunpack.c.h.b16 %v378
    %v768 = vunpack.c.l.b16 %v379
    %v769 = vunpack.c.h.b16 %v379
    %v770 = vunpack.c.l.b16 %v380
    %v771 = vunpack.c.h.b16 %v380
    %v772 = vunpack.c.l.b16 %v381
    %v773 = vunpack.c.h.b16 %v381
    %v774 = vunpack.c.l.b16 %v382
    %v775 = vunpack.c.h.b16 %v382
    %v776 = vunpack.c.l.b16 %v383
    %v777 = vunpack.c.h.b16 %v383
    %v778 = vunpack.c.l.b16 %v384
    %v779 = vunpack.c.h.b16 %v384
    %v780 = vunpack.c.l.b16 %v385
    %v781 = vunpack.c.h.b16 %v385
    %v782 = vunpack.c.l.b16 %v386
    %v783 = vunpack.c.h.b16 %v386
    %v784 = vunpack.c.l.b16 %v387
    %v785 = vunpack.c.h.b16 %v387
    %v786 = vunpack.c.l.b16 %v388
    %v787 = vunpack.c.h.b16 %v388
    %v788 = vunpack.c.l.b16 %v389
    %v789 = vunpack.c.h.b16 %v389
    %v790 = vunpack.c.l.b16 %v390
    %v791 = vunpack.c.h.b16 %v390
    %v792 = vunpack.c.l.b16 %v391
    %v793 = vunpack.c.h.b16 %v391
    %v794 = vunpack.c.l.b16 %v392
    %v795 = vunpack.c.h.b16 %v392
    %v796 = vunpack.c.l.b16 %v393
    %v797 = vunpack.c.h.b16 %v393
    %v798 = vunpack.c.l.b16 %v394
    %v799 = vunpack.c.h.b16 %v394
    %v800 = vunpack.c.l.b16 %v395
    %v801 = vunpack.c.h.b16 %v395
    %v802 = vpack.c.b16 %v550, %v546
    %v803 = vpack.c.b16 %v551, %v547
    %v804 = vpack.c.b16 %v552, %v548
    %v805 = vpack.c.b16 %v553, %v549
    %v806 = vpack.c.b16 %v558, %v554
    %v807 = vpack.c.b16 %v559, %v555
    %v808 = vpack.c.b16 %v560, %v556
    %v809 = vpack.c.b16 %v561, %v557
    %v810 = vpack.c.b16 %v566, %v562
    %v811 = vpack.c.b16 %v567, %v563
    %v812 = vpack.c.b16 %v568, %v564
    %v813 = vpack.c.b16 %v569, %v565
    %v814 = vpack.c.b16 %v574, %v570
    %v815 = vpack.c.b16 %v575, %v571
    %v816 = vpack.c.b16 %v576, %v572
    %v817 = vpack.c.b16 %v577, %v573
    %v818 = vpack.c.b16 %v582, %v578
    %v819 = vpack.c.b16 %v583, %v579
    %v820 = vpack.c.b16 %v584, %v580
    %v821 = vpack.c.b16 %v585, %v581
    %v822 = vpack.c.b16 %v590, %v586
    %v823 = vpack.c.b16 %v591, %v587
    %v824 = vpack.c.b16 %v592, %v588
    %v825 = vpack.c.b16 %v593, %v589
    %v826 = vpack.c.b16 %v598, %v594
    %v827 = vpack.c.b16 %v599, %v595
    %v828 = vpack.c.b16 %v600, %v596
    %v829 = vpack.c.b16 %v601, %v597
    %v830 = vpack.c.b16 %v606, %v602
    %v831 = vpack.c.b16 %v607, %v603
    %v832 = vpack.c.b16 %v608, %v604
    %v833 = vpack.c.b16 %v609, %v605
    %v834 = vpack.c.b16 %v614, %v610
    %v835 = vpack.c.b16 %v615, %v611
    %v836 = vpack.c.b16 %v616, %v612
    %v837 = vpack.c.b16 %v617, %v613
    %v838 = vpack.c.b16 %v622, %v618
    %v839 = vpack.c.b16 %v623, %v619
    %v840 = vpack.c.b16 %v624, %v620
    %v841 = vpack.c.b16 %v625, %v621
    %v842 = vpack.c.b16 %v630, %v626
    %v843 = vpack.c.b16 %v631, %v627
    %v844 = vpack.c.b16 %v632, %v628
    %v845 = vpack.c.b16 %v633, %v629
    %v846 = vpack.c.b16 %v638, %v634
    %v847 = vpack.c.b16 %v639, %v635
    %v848 = vpack.c.b16 %v640, %v636
    %v849 = vpack.c.b16 %v641, %v637
    %v850 = vpack.c.b16 %v646, %v642
    %v851 = vpack.c.b16 %v647, %v643
    %v852 = vpack.c.b16 %v648, %v644
    %v853 = vpack.c.b16 %v649, %v645
    %v854 = vpack.c.b16 %v654, %v650
    %v855 = vpack.c.b16 %v655, %v651
    %v856 = vpack.c.b16 %v656, %v652
    %v857 = vpack.c.b16 %v657, %v653
    %v858 = vpack.c.b16 %v662, %v658
    %v859 = vpack.c.b16 %v663, %v659
    %v860 = vpack.c.b16 %v664, %v660
    %v861 = vpack.c.b16 %v665, %v661
    %v862 = vpack.c.b16 %v670, %v666
    %v863 = vpack.c.b16 %v671, %v667
    %v864 = vpack.c.b16 %v672, %v668
    %v865 = vpack.c.b16 %v673, %v669
    %v866 = vpack.c.b16 %v678, %v674
    %v867 = vpack.c.b16 %v679, %v675
    %v868 = vpack.c.b16 %v680, %v676
    %v869 = vpack.c.b16 %v681, %v677
    %v870 = vpack.c.b16 %v686, %v682
    %v871 = vpack.c.b16 %v687, %v683
    %v872 = vpack.c.b16 %v688, %v684
    %v873 = vpack.c.b16 %v689, %v685
    %v874 = vpack.c.b16 %v694, %v690
    %v875 = vpack.c.b16 %v695, %v691
    %v876 = vpack.c.b16 %v696, %v692
    %v877 = vpack.c.b16 %v697, %v693
    %v878 = vpack.c.b16 %v702, %v698
    %v879 = vpack.c.b16 %v703, %v699
    %v880 = vpack.c.b16 %v704, %v700
    %v881 = vpack.c.b16 %v705, %v701
    %v882 = vpack.c.b16 %v710, %v706
    %v883 = vpack.c.b16 %v711, %v707
    %v884 = vpack.c.b16 %v712, %v708
    %v885 = vpack.c.b16 %v713, %v709
    %v886 = vpack.c.b16 %v718, %v714
    %v887 = vpack.c.b16 %v719, %v715
    %v888 = vpack.c.b16 %v720, %v716
    %v889 = vpack.c.b16 %v721, %v717
    %v890 = vpack.c.b16 %v726, %v722
    %v891 = vpack.c.b16 %v727, %v723
    %v892 = vpack.c.b16 %v728, %v724
    %v893 = vpack.c.b16 %v729, %v725
    %v894 = vpack.c.b16 %v734, %v730
    %v895 = vpack.c.b16 %v735, %v731
    %v896 = vpack.c.b16 %v736, %v732
    %v897 = vpack.c.b16 %v737, %v733
    %v898 = vpack.c.b16 %v742, %v738
    %v899 = vpack.c.b16 %v743, %v739
    %v900 = vpack.c.b16 %v744, %v740
    %v901 = vpack.c.b16 %v745, %v741
    %v902 = vpack.c.b16 %v750, %v746
    %v903 = vpack.c.b16 %v751, %v747
    %v904 = vpack.c.b16 %v752, %v748
    %v905 = vpack.c.b16 %v753, %v749
    %v906 = vpack.c.b16 %v758, %v754
    %v907 = vpack.c.b16 %v759, %v755
    %v908 = vpack.c.b16 %v760, %v756
    %v909 = vpack.c.b16 %v761, %v757
    %v910 = vpack.c.b16 %v766, %v762
    %v911 = vpack.c.b16 %v767, %v763
    %v912 = vpack.c.b16 %v768, %v764
    %v913 = vpack.c.b16 %v769, %v765
    %v914 = vpack.c.b16 %v774, %v770
    %v915 = vpack.c.b16 %v775, %v771
    %v916 = vpack.c.b16 %v776, %v772
    %v917 = vpack.c.b16 %v777, %v773
    %v918 = vpack.c.b16 %v782, %v778
    %v919 = vpack.c.b16 %v783, %v779
    %v920 = vpack.c.b16 %v784, %v780
    %v921 = vpack.c.b16 %v785, %v781
    %v922 = vpack.c.b16 %v790, %v786
    %v923 = vpack.c.b16 %v791, %v787
    %v924 = vpack.c.b16 %v792, %v788
    %v925 = vpack.c.b16 %v793, %v789
    %v926 = vpack.c.b16 %v798, %v794
    %v927 = vpack.c.b16 %v799, %v795
    %v928 = vpack.c.b16 %v800, %v796
    %v929 = vpack.c.b16 %v801, %v797
    %1058 = vmatprep.subr.bf16.mxu0 %v803
    %1059 = vmatpush1.bf16.msra.mxu0 %v802
    %1060 = vmatprep.subr.bf16.mxu0 %v807
    %1061 = vmatpush1.bf16.msra.mxu0 %v806
    %1062 = vmatprep.subr.bf16.mxu0 %v811
    %1063 = vmatpush1.bf16.msra.mxu0 %v810
    %1064 = vmatprep.subr.bf16.mxu0 %v815
    %1065 = vmatpush1.bf16.msra.mxu0 %v814
    %1066 = vmatprep.subr.bf16.mxu0 %v819
    %1067 = vmatpush1.bf16.msra.mxu0 %v818
    %1068 = vmatprep.subr.bf16.mxu0 %v823
    %1069 = vmatpush1.bf16.msra.mxu0 %v822
    %1070 = vmatprep.subr.bf16.mxu0 %v827
    %1071 = vmatpush1.bf16.msra.mxu0 %v826
    %1072 = vmatprep.subr.bf16.mxu0 %v831
    %1073 = vmatpush1.bf16.msra.mxu0 %v830
    %1074 = vmatprep.subr.bf16.mxu0 %v835
    %1075 = vmatpush1.bf16.msra.mxu0 %v834
    %1076 = vmatprep.subr.bf16.mxu0 %v839
    %1077 = vmatpush1.bf16.msra.mxu0 %v838
    %1078 = vmatprep.subr.bf16.mxu0 %v843
    %1079 = vmatpush1.bf16.msra.mxu0 %v842
    %1080 = vmatprep.subr.bf16.mxu0 %v847
    %1081 = vmatpush1.bf16.msra.mxu0 %v846
    %1082 = vmatprep.subr.bf16.mxu0 %v851
    %1083 = vmatpush1.bf16.msra.mxu0 %v850
    %1084 = vmatprep.subr.bf16.mxu0 %v855
    %1085 = vmatpush1.bf16.msra.mxu0 %v854
    %1086 = vmatprep.subr.bf16.mxu0 %v859
    %1087 = vmatpush1.bf16.msra.mxu0 %v858
    %1088 = vmatprep.subr.bf16.mxu0 %v863
    %1089 = vmatpush1.bf16.msra.mxu0 %v862
    %1090 = vmatprep.mubr.bf16.mxu0 %v265
    %1091 = vmatmul.mubr.bf16.gmra.mrb[0].mxu0 %v264
    %v1092 = vpop.f32.mrb[0].mxu0
    %v1093 = vadd.f32 %v401, %v1092
    %v1094 = vpop.f32.mrb[0].mxu0
    %v1095 = vadd.f32 %v405, %v1094
    %v1096 = vpop.f32.mrb[0].mxu0
    %v1097 = vpop.f32.mrb[0].mxu0
    %1098 = vdwg.mxu0
    %1099 = vmatprep.subr.bf16.mxu0 %v867
    %1100 = vmatpush1.bf16.msra.mxu0 %v866
    %1101 = vmatprep.subr.bf16.mxu0 %v871
    %1102 = vmatpush1.bf16.msra.mxu0 %v870
    %1103 = vmatprep.subr.bf16.mxu0 %v875
    %1104 = vmatpush1.bf16.msra.mxu0 %v874
    %1105 = vmatprep.subr.bf16.mxu0 %v879
    %1106 = vmatpush1.bf16.msra.mxu0 %v878
    %1107 = vmatprep.subr.bf16.mxu0 %v883
    %1108 = vmatpush1.bf16.msra.mxu0 %v882
    %1109 = vmatprep.subr.bf16.mxu0 %v887
    %1110 = vmatpush1.bf16.msra.mxu0 %v886
    %1111 = vmatprep.subr.bf16.mxu0 %v891
    %1112 = vmatpush1.bf16.msra.mxu0 %v890
    %1113 = vmatprep.subr.bf16.mxu0 %v895
    %1114 = vmatpush1.bf16.msra.mxu0 %v894
    %1115 = vmatprep.subr.bf16.mxu0 %v899
    %1116 = vmatpush1.bf16.msra.mxu0 %v898
    %1117 = vmatprep.subr.bf16.mxu0 %v903
    %1118 = vmatpush1.bf16.msra.mxu0 %v902
    %1119 = vmatprep.subr.bf16.mxu0 %v907
    %1120 = vmatpush1.bf16.msra.mxu0 %v906
    %1121 = vmatprep.subr.bf16.mxu0 %v911
    %1122 = vmatpush1.bf16.msra.mxu0 %v910
    %1123 = vmatprep.subr.bf16.mxu0 %v915
    %1124 = vmatpush1.bf16.msra.mxu0 %v914
    %1125 = vmatprep.subr.bf16.mxu0 %v919
    %1126 = vmatpush1.bf16.msra.mxu0 %v918
    %1127 = vmatprep.subr.bf16.mxu0 %v923
    %1128 = vmatpush1.bf16.msra.mxu0 %v922
    %1129 = vmatprep.subr.bf16.mxu0 %v927
    %1130 = vmatpush1.bf16.msra.mxu0 %v926
    %1131 = vmatprep.mubr.bf16.mxu0 %v267
    %1132 = vmatmul.mubr.bf16.gmra.mrb[0].mxu0 %v266
    %v1133 = vpop.f32.mrb[0].mxu0
    %v1134 = vadd.f32 %v1093, %v1133
    %v1135 = vpop.f32.mrb[0].mxu0
    %v1136 = vadd.f32 %v1095, %v1135
    %v1137 = vpop.f32.mrb[0].mxu0
    %v1138 = vpop.f32.mrb[0].mxu0
    %1139 = vdwg.mxu0
    %1140 = vmatprep.subr.bf16.mxu0 %v805
    %1141 = vmatpush1.bf16.msra.mxu0 %v804
    %1142 = vmatprep.subr.bf16.mxu0 %v809
    %1143 = vmatpush1.bf16.msra.mxu0 %v808
    %1144 = vmatprep.subr.bf16.mxu0 %v813
    %1145 = vmatpush1.bf16.msra.mxu0 %v812
    %1146 = vmatprep.subr.bf16.mxu0 %v817
    %1147 = vmatpush1.bf16.msra.mxu0 %v816
    %1148 = vmatprep.subr.bf16.mxu0 %v821
    %1149 = vmatpush1.bf16.msra.mxu0 %v820
    %1150 = vmatprep.subr.bf16.mxu0 %v825
    %1151 = vmatpush1.bf16.msra.mxu0 %v824
    %1152 = vmatprep.subr.bf16.mxu0 %v829
    %1153 = vmatpush1.bf16.msra.mxu0 %v828
    %1154 = vmatprep.subr.bf16.mxu0 %v833
    %1155 = vmatpush1.bf16.msra.mxu0 %v832
    %1156 = vmatprep.subr.bf16.mxu0 %v837
    %1157 = vmatpush1.bf16.msra.mxu0 %v836
    %1158 = vmatprep.subr.bf16.mxu0 %v841
    %1159 = vmatpush1.bf16.msra.mxu0 %v840
    %1160 = vmatprep.subr.bf16.mxu0 %v845
    %1161 = vmatpush1.bf16.msra.mxu0 %v844
    %1162 = vmatprep.subr.bf16.mxu0 %v849
    %1163 = vmatpush1.bf16.msra.mxu0 %v848
    %1164 = vmatprep.subr.bf16.mxu0 %v853
    %1165 = vmatpush1.bf16.msra.mxu0 %v852
    %1166 = vmatprep.subr.bf16.mxu0 %v857
    %1167 = vmatpush1.bf16.msra.mxu0 %v856
    %1168 = vmatprep.subr.bf16.mxu0 %v861
    %1169 = vmatpush1.bf16.msra.mxu0 %v860
    %1170 = vmatprep.subr.bf16.mxu0 %v865
    %1171 = vmatpush1.bf16.msra.mxu0 %v864
    %1172 = vmatprep.mubr.bf16.mxu0 %v265
    %1173 = vmatmul.mubr.bf16.gmra.mrb[0].mxu0 %v264
    %v1174 = vpop.f32.mrb[0].mxu0
    %v1175 = vadd.f32 %v409, %v1174
    %v1176 = vpop.f32.mrb[0].mxu0
    %v1177 = vadd.f32 %v413, %v1176
    %v1178 = vpop.f32.mrb[0].mxu0
    %v1179 = vpop.f32.mrb[0].mxu0
    %1180 = vdwg.mxu0
    %1181 = vmatprep.subr.bf16.mxu0 %v869
    %1182 = vmatpush1.bf16.msra.mxu0 %v868
    %1183 = vmatprep.subr.bf16.mxu0 %v873
    %1184 = vmatpush1.bf16.msra.mxu0 %v872
    %1185 = vmatprep.subr.bf16.mxu0 %v877
    %1186 = vmatpush1.bf16.msra.mxu0 %v876
    %1187 = vmatprep.subr.bf16.mxu0 %v881
    %1188 = vmatpush1.bf16.msra.mxu0 %v880
    %1189 = vmatprep.subr.bf16.mxu0 %v885
    %1190 = vmatpush1.bf16.msra.mxu0 %v884
    %1191 = vmatprep.subr.bf16.mxu0 %v889
    %1192 = vmatpush1.bf16.msra.mxu0 %v888
    %1193 = vmatprep.subr.bf16.mxu0 %v893
    %1194 = vmatpush1.bf16.msra.mxu0 %v892
    %1195 = vmatprep.subr.bf16.mxu0 %v897
    %1196 = vmatpush1.bf16.msra.mxu0 %v896
    %1197 = vmatprep.subr.bf16.mxu0 %v901
    %1198 = vmatpush1.bf16.msra.mxu0 %v900
    %1199 = vmatprep.subr.bf16.mxu0 %v905
    %1200 = vmatpush1.bf16.msra.mxu0 %v904
    %1201 = vmatprep.subr.bf16.mxu0 %v909
    %1202 = vmatpush1.bf16.msra.mxu0 %v908
    %1203 = vmatprep.subr.bf16.mxu0 %v913
    %1204 = vmatpush1.bf16.msra.mxu0 %v912
    %1205 = vmatprep.subr.bf16.mxu0 %v917
    %1206 = vmatpush1.bf16.msra.mxu0 %v916
    %1207 = vmatprep.subr.bf16.mxu0 %v921
    %1208 = vmatpush1.bf16.msra.mxu0 %v920
    %1209 = vmatprep.subr.bf16.mxu0 %v925
    %1210 = vmatpush1.bf16.msra.mxu0 %v924
    %1211 = vmatprep.subr.bf16.mxu0 %v929
    %1212 = vmatpush1.bf16.msra.mxu0 %v928
    %1213 = vmatprep.mubr.bf16.mxu0 %v267
    %1214 = vmatmul.mubr.bf16.gmra.mrb[0].mxu0 %v266
    %v1215 = vpop.f32.mrb[0].mxu0
    %v1216 = vadd.f32 %v1175, %v1215
    %v1217 = vpop.f32.mrb[0].mxu0
    %v1218 = vadd.f32 %v1177, %v1217
    %v1219 = vpop.f32.mrb[0].mxu0
    %v1220 = vpop.f32.mrb[0].mxu0
    %1221 = vdwg.mxu0
    %v1222 = vmax.f32 %v1134, 0.0
    %v1223 = vmax.f32 %v1136, 0.0
    %v1224 = vmax.f32 %v1216, 0.0
    %v1225 = vmax.f32 %v1218, 0.0
    %v1226 = vpack.c.bf16 %v1222, %v1222
    %v1227 = vpack.c.bf16 %v1223, %v1223
    %v1228 = vpack.c.bf16 %v1224, %v1224
    %v1229 = vpack.c.bf16 %v1225, %v1225
    %v1230 = vld [vmem:[%s5] sm:$0xf]
    %v1231 = vld [vmem:[%s5 + $0x4] sm:$0xf]
    %v1232 = vld [vmem:[%s5 + $0x8] sm:$0xf]
    %v1233 = vld [vmem:[%s5 + $0xc] sm:$0xf]
    %v1234 = vld [vmem:[%s5 + $0x10] sm:$0xf]
    %v1235 = vld [vmem:[%s5 + $0x14] sm:$0xf]
    %v1236 = vld [vmem:[%s5 + $0x18] sm:$0xf]
    %v1237 = vld [vmem:[%s5 + $0x1c] sm:$0xf]
    %v1238 = vld [vmem:[%s5 + $0x20] sm:$0xf]
    %v1239 = vld [vmem:[%s5 + $0x24] sm:$0xf]
    %v1240 = vld [vmem:[%s5 + $0x28] sm:$0xf]
    %v1241 = vld [vmem:[%s5 + $0x2c] sm:$0xf]
    %v1242 = vld [vmem:[%s5 + $0x30] sm:$0xf]
    %v1243 = vld [vmem:[%s5 + $0x34] sm:$0xf]
    %v1244 = vld [vmem:[%s5 + $0x38] sm:$0xf]
    %v1245 = vld [vmem:[%s5 + $0x3c] sm:$0xf]
    %v1246 = vld [vmem:[%s5 + $0x40] sm:$0xf]
    %v1247 = vld [vmem:[%s5 + $0x44] sm:$0xf]
    %v1248 = vld [vmem:[%s5 + $0x48] sm:$0xf]
    %v1249 = vld [vmem:[%s5 + $0x4c] sm:$0xf]
    %v1250 = vld [vmem:[%s5 + $0x50] sm:$0xf]
    %v1251 = vld [vmem:[%s5 + $0x54] sm:$0xf]
    %v1252 = vld [vmem:[%s5 + $0x58] sm:$0xf]
    %v1253 = vld [vmem:[%s5 + $0x5c] sm:$0xf]
    %v1254 = vld [vmem:[%s5 + $0x60] sm:$0xf]
    %v1255 = vld [vmem:[%s5 + $0x64] sm:$0xf]
    %v1256 = vld [vmem:[%s5 + $0x68] sm:$0xf]
    %v1257 = vld [vmem:[%s5 + $0x6c] sm:$0xf]
    %v1258 = vld [vmem:[%s5 + $0x70] sm:$0xf]
    %v1259 = vld [vmem:[%s5 + $0x74] sm:$0xf]
    %v1260 = vld [vmem:[%s5 + $0x78] sm:$0xf]
    %v1261 = vld [vmem:[%s5 + $0x7c] sm:$0xf]
    %v1262 = vld [vmem:[%s5 + $0x80] sm:$0xf]
    %v1263 = vld [vmem:[%s5 + $0x84] sm:$0xf]
    %v1264 = vld [vmem:[%s5 + $0x88] sm:$0xf]
    %v1265 = vld [vmem:[%s5 + $0x8c] sm:$0xf]
    %v1266 = vld [vmem:[%s5 + $0x90] sm:$0xf]
    %v1267 = vld [vmem:[%s5 + $0x94] sm:$0xf]
    %v1268 = vld [vmem:[%s5 + $0x98] sm:$0xf]
    %v1269 = vld [vmem:[%s5 + $0x9c] sm:$0xf]
    %v1270 = vld [vmem:[%s5 + $0xa0] sm:$0xf]
    %v1271 = vld [vmem:[%s5 + $0xa4] sm:$0xf]
    %v1272 = vld [vmem:[%s5 + $0xa8] sm:$0xf]
    %v1273 = vld [vmem:[%s5 + $0xac] sm:$0xf]
    %v1274 = vld [vmem:[%s5 + $0xb0] sm:$0xf]
    %v1275 = vld [vmem:[%s5 + $0xb4] sm:$0xf]
    %v1276 = vld [vmem:[%s5 + $0xb8] sm:$0xf]
    %v1277 = vld [vmem:[%s5 + $0xbc] sm:$0xf]
    %v1278 = vld [vmem:[%s5 + $0xc0] sm:$0xf]
    %v1279 = vld [vmem:[%s5 + $0xc4] sm:$0xf]
    %v1280 = vld [vmem:[%s5 + $0xc8] sm:$0xf]
    %v1281 = vld [vmem:[%s5 + $0xcc] sm:$0xf]
    %v1282 = vld [vmem:[%s5 + $0xd0] sm:$0xf]
    %v1283 = vld [vmem:[%s5 + $0xd4] sm:$0xf]
    %v1284 = vld [vmem:[%s5 + $0xd8] sm:$0xf]
    %v1285 = vld [vmem:[%s5 + $0xdc] sm:$0xf]
    %v1286 = vld [vmem:[%s5 + $0xe0] sm:$0xf]
    %v1287 = vld [vmem:[%s5 + $0xe4] sm:$0xf]
    %v1288 = vld [vmem:[%s5 + $0xe8] sm:$0xf]
    %v1289 = vld [vmem:[%s5 + $0xec] sm:$0xf]
    %v1290 = vld [vmem:[%s5 + $0xf0] sm:$0xf]
    %v1291 = vld [vmem:[%s5 + $0xf4] sm:$0xf]
    %v1292 = vld [vmem:[%s5 + $0xf8] sm:$0xf]
    %v1293 = vld [vmem:[%s5 + $0xfc] sm:$0xf]
    %v1294 = vld [vmem:[%s6] sm:$0x1]
    %v1296 = vlaneseq
    %v1297 = vshrl.u32 %v1296, 7
    %v1298 = vsub.s32 0, %v1297
    %v1299 = vrot.slane %v1294, %v1298
    %v1365 = vunpack.c.l.b16 %v1230
    %v1366 = vunpack.c.l.b16 %v1231
    %v1367 = vunpack.c.l.b16 %v1232
    %v1368 = vunpack.c.l.b16 %v1233
    %v1369 = vunpack.c.l.b16 %v1234
    %v1370 = vunpack.c.l.b16 %v1235
    %v1371 = vunpack.c.l.b16 %v1236
    %v1372 = vunpack.c.l.b16 %v1237
    %v1373 = vunpack.c.l.b16 %v1238
    %v1374 = vunpack.c.l.b16 %v1239
    %v1375 = vunpack.c.l.b16 %v1240
    %v1376 = vunpack.c.l.b16 %v1241
    %v1377 = vunpack.c.l.b16 %v1242
    %v1378 = vunpack.c.l.b16 %v1243
    %v1379 = vunpack.c.l.b16 %v1244
    %v1380 = vunpack.c.l.b16 %v1245
    %v1381 = vunpack.c.l.b16 %v1246
    %v1382 = vunpack.c.l.b16 %v1247
    %v1383 = vunpack.c.l.b16 %v1248
    %v1384 = vunpack.c.l.b16 %v1249
    %v1385 = vunpack.c.l.b16 %v1250
    %v1386 = vunpack.c.l.b16 %v1251
    %v1387 = vunpack.c.l.b16 %v1252
    %v1388 = vunpack.c.l.b16 %v1253
    %v1389 = vunpack.c.l.b16 %v1254
    %v1390 = vunpack.c.l.b16 %v1255
    %v1391 = vunpack.c.l.b16 %v1256
    %v1392 = vunpack.c.l.b16 %v1257
    %v1393 = vunpack.c.l.b16 %v1258
    %v1394 = vunpack.c.l.b16 %v1259
    %v1395 = vunpack.c.l.b16 %v1260
    %v1396 = vunpack.c.l.b16 %v1261
    %v1397 = vunpack.c.l.b16 %v1262
    %v1398 = vunpack.c.l.b16 %v1263
    %v1399 = vunpack.c.l.b16 %v1264
    %v1400 = vunpack.c.l.b16 %v1265
    %v1401 = vunpack.c.l.b16 %v1266
    %v1402 = vunpack.c.l.b16 %v1267
    %v1403 = vunpack.c.l.b16 %v1268
    %v1404 = vunpack.c.l.b16 %v1269
    %v1405 = vunpack.c.l.b16 %v1270
    %v1406 = vunpack.c.l.b16 %v1271
    %v1407 = vunpack.c.l.b16 %v1272
    %v1408 = vunpack.c.l.b16 %v1273
    %v1409 = vunpack.c.l.b16 %v1274
    %v1410 = vunpack.c.l.b16 %v1275
    %v1411 = vunpack.c.l.b16 %v1276
    %v1412 = vunpack.c.l.b16 %v1277
    %v1413 = vunpack.c.l.b16 %v1278
    %v1414 = vunpack.c.l.b16 %v1279
    %v1415 = vunpack.c.l.b16 %v1280
    %v1416 = vunpack.c.l.b16 %v1281
    %v1417 = vunpack.c.l.b16 %v1282
    %v1418 = vunpack.c.l.b16 %v1283
    %v1419 = vunpack.c.l.b16 %v1284
    %v1420 = vunpack.c.l.b16 %v1285
    %v1421 = vunpack.c.l.b16 %v1286
    %v1422 = vunpack.c.l.b16 %v1287
    %v1423 = vunpack.c.l.b16 %v1288
    %v1424 = vunpack.c.l.b16 %v1289
    %v1425 = vunpack.c.l.b16 %v1290
    %v1426 = vunpack.c.l.b16 %v1291
    %v1427 = vunpack.c.l.b16 %v1292
    %v1428 = vunpack.c.l.b16 %v1293
    %v1429 = vpack.c.b16 %v1366, %v1365
    %v1430 = vpack.c.b16 %v1368, %v1367
    %v1431 = vpack.c.b16 %v1370, %v1369
    %v1432 = vpack.c.b16 %v1372, %v1371
    %v1433 = vpack.c.b16 %v1374, %v1373
    %v1434 = vpack.c.b16 %v1376, %v1375
    %v1435 = vpack.c.b16 %v1378, %v1377
    %v1436 = vpack.c.b16 %v1380, %v1379
    %v1437 = vpack.c.b16 %v1382, %v1381
    %v1438 = vpack.c.b16 %v1384, %v1383
    %v1439 = vpack.c.b16 %v1386, %v1385
    %v1440 = vpack.c.b16 %v1388, %v1387
    %v1441 = vpack.c.b16 %v1390, %v1389
    %v1442 = vpack.c.b16 %v1392, %v1391
    %v1443 = vpack.c.b16 %v1394, %v1393
    %v1444 = vpack.c.b16 %v1396, %v1395
    %v1445 = vpack.c.b16 %v1398, %v1397
    %v1446 = vpack.c.b16 %v1400, %v1399
    %v1447 = vpack.c.b16 %v1402, %v1401
    %v1448 = vpack.c.b16 %v1404, %v1403
    %v1449 = vpack.c.b16 %v1406, %v1405
    %v1450 = vpack.c.b16 %v1408, %v1407
    %v1451 = vpack.c.b16 %v1410, %v1409
    %v1452 = vpack.c.b16 %v1412, %v1411
    %v1453 = vpack.c.b16 %v1414, %v1413
    %v1454 = vpack.c.b16 %v1416, %v1415
    %v1455 = vpack.c.b16 %v1418, %v1417
    %v1456 = vpack.c.b16 %v1420, %v1419
    %v1457 = vpack.c.b16 %v1422, %v1421
    %v1458 = vpack.c.b16 %v1424, %v1423
    %v1459 = vpack.c.b16 %v1426, %v1425
    %v1460 = vpack.c.b16 %v1428, %v1427
    %1493 = vmatprep.subr.bf16.mxu0 0
    %1494 = vmatpush1.bf16.msra.mxu0 %v1429
    %1495 = vmatprep.subr.bf16.mxu0 0
    %1496 = vmatpush1.bf16.msra.mxu0 %v1430
    %1497 = vmatprep.subr.bf16.mxu0 0
    %1498 = vmatpush1.bf16.msra.mxu0 %v1431
    %1499 = vmatprep.subr.bf16.mxu0 0
    %1500 = vmatpush1.bf16.msra.mxu0 %v1432
    %1501 = vmatprep.subr.bf16.mxu0 0
    %1502 = vmatpush1.bf16.msra.mxu0 %v1433
    %1503 = vmatprep.subr.bf16.mxu0 0
    %1504 = vmatpush1.bf16.msra.mxu0 %v1434
    %1505 = vmatprep.subr.bf16.mxu0 0
    %1506 = vmatpush1.bf16.msra.mxu0 %v1435
    %1507 = vmatprep.subr.bf16.mxu0 0
    %1508 = vmatpush1.bf16.msra.mxu0 %v1436
    %1509 = vmatprep.subr.bf16.mxu0 0
    %1510 = vmatpush1.bf16.msra.mxu0 %v1437
    %1511 = vmatprep.subr.bf16.mxu0 0
    %1512 = vmatpush1.bf16.msra.mxu0 %v1438
    %1513 = vmatprep.subr.bf16.mxu0 0
    %1514 = vmatpush1.bf16.msra.mxu0 %v1439
    %1515 = vmatprep.subr.bf16.mxu0 0
    %1516 = vmatpush1.bf16.msra.mxu0 %v1440
    %1517 = vmatprep.subr.bf16.mxu0 0
    %1518 = vmatpush1.bf16.msra.mxu0 %v1441
    %1519 = vmatprep.subr.bf16.mxu0 0
    %1520 = vmatpush1.bf16.msra.mxu0 %v1442
    %1521 = vmatprep.subr.bf16.mxu0 0
    %1522 = vmatpush1.bf16.msra.mxu0 %v1443
    %1523 = vmatprep.subr.bf16.mxu0 0
    %1524 = vmatpush1.bf16.msra.mxu0 %v1444
    %1525 = vmatprep.mubr.bf16.mxu0 %v1227
    %1526 = vmatmul.mubr.bf16.gmra.mrb[0].mxu0 %v1226
    %v1527 = vpop.f32.mrb[0].mxu0
    %v1528 = vadd.f32 %v1299, %v1527
    %v1529 = vpop.f32.mrb[0].mxu0
    %v1530 = vpop.f32.mrb[0].mxu0
    %v1531 = vpop.f32.mrb[0].mxu0
    %1532 = vdwg.mxu0
    %1533 = vmatprep.subr.bf16.mxu0 0
    %1534 = vmatpush1.bf16.msra.mxu0 %v1445
    %1535 = vmatprep.subr.bf16.mxu0 0
    %1536 = vmatpush1.bf16.msra.mxu0 %v1446
    %1537 = vmatprep.subr.bf16.mxu0 0
    %1538 = vmatpush1.bf16.msra.mxu0 %v1447
    %1539 = vmatprep.subr.bf16.mxu0 0
    %1540 = vmatpush1.bf16.msra.mxu0 %v1448
    %1541 = vmatprep.subr.bf16.mxu0 0
    %1542 = vmatpush1.bf16.msra.mxu0 %v1449
    %1543 = vmatprep.subr.bf16.mxu0 0
    %1544 = vmatpush1.bf16.msra.mxu0 %v1450
    %1545 = vmatprep.subr.bf16.mxu0 0
    %1546 = vmatpush1.bf16.msra.mxu0 %v1451
    %1547 = vmatprep.subr.bf16.mxu0 0
    %1548 = vmatpush1.bf16.msra.mxu0 %v1452
    %1549 = vmatprep.subr.bf16.mxu0 0
    %1550 = vmatpush1.bf16.msra.mxu0 %v1453
    %1551 = vmatprep.subr.bf16.mxu0 0
    %1552 = vmatpush1.bf16.msra.mxu0 %v1454
    %1553 = vmatprep.subr.bf16.mxu0 0
    %1554 = vmatpush1.bf16.msra.mxu0 %v1455
    %1555 = vmatprep.subr.bf16.mxu0 0
    %1556 = vmatpush1.bf16.msra.mxu0 %v1456
    %1557 = vmatprep.subr.bf16.mxu0 0
    %1558 = vmatpush1.bf16.msra.mxu0 %v1457
    %1559 = vmatprep.subr.bf16.mxu0 0
    %1560 = vmatpush1.bf16.msra.mxu0 %v1458
    %1561 = vmatprep.subr.bf16.mxu0 0
    %1562 = vmatpush1.bf16.msra.mxu0 %v1459
    %1563 = vmatprep.subr.bf16.mxu0 0
    %1564 = vmatpush1.bf16.msra.mxu0 %v1460
    %1565 = vmatprep.mubr.bf16.mxu0 %v1229
    %1566 = vmatmul.mubr.bf16.gmra.mrb[0].mxu0 %v1228
    %v1567 = vpop.f32.mrb[0].mxu0
    %v1568 = vadd.f32 %v1528, %v1567
    %v1569 = vpop.f32.mrb[0].mxu0
    %v1570 = vpop.f32.mrb[0].mxu0
    %v1571 = vpop.f32.mrb[0].mxu0
    %1572 = vdwg.mxu0
    %v1573 = vmax.f32 %v1568, 0.0
    %v1574 = vpack.c.bf16 %v1573, %v1573
    %v1575 = vld [vmem:[%s7] sm:$0xf]
    %v1576 = vld [vmem:[%s7 + $0x4] sm:$0xf]
    %v1577 = vld [vmem:[%s7 + $0x8] sm:$0xf]
    %v1578 = vld [vmem:[%s7 + $0xc] sm:$0xf]
    %v1579 = vld [vmem:[%s8] sm:$0x1]
    %v1581 = vlaneseq
    %v1582 = vshrl.u32 %v1581, 7
    %v1583 = vsub.s32 0, %v1582
    %v1584 = vrot.slane %v1579, %v1583
    %v1590 = vunpack.c.l.b16 %v1575
    %v1591 = vunpack.c.l.b16 %v1576
    %v1592 = vunpack.c.l.b16 %v1577
    %v1593 = vunpack.c.l.b16 %v1578
    %v1594 = vpack.c.b16 %v1591, %v1590
    %v1595 = vpack.c.b16 %v1593, %v1592
    %vm1598 = vcmask 261120
    %v1600 = vsel %vm1598, %v1574, 0
    %1602 = vmatprep.subr.bf16.mxu0 0
    %1603 = vmatpush1.bf16.msra.mxu0 %v1594
    %1604 = vmatprep.subr.bf16.mxu0 0
    %1605 = vmatpush1.bf16.msra.mxu0 %v1595
    %1606 = vmatprep.subr.bf16.mxu0 0
    %1607 = vmatpush1.bf16.msra.mxu0 0
    %1608 = vmatprep.subr.bf16.mxu0 0
    %1609 = vmatpush1.bf16.msra.mxu0 0
    %1610 = vmatprep.subr.bf16.mxu0 0
    %1611 = vmatpush1.bf16.msra.mxu0 0
    %1612 = vmatprep.subr.bf16.mxu0 0
    %1613 = vmatpush1.bf16.msra.mxu0 0
    %1614 = vmatprep.subr.bf16.mxu0 0
    %1615 = vmatpush1.bf16.msra.mxu0 0
    %1616 = vmatprep.subr.bf16.mxu0 0
    %1617 = vmatpush1.bf16.msra.mxu0 0
    %1618 = vmatprep.subr.bf16.mxu0 0
    %1619 = vmatpush1.bf16.msra.mxu0 0
    %1620 = vmatprep.subr.bf16.mxu0 0
    %1621 = vmatpush1.bf16.msra.mxu0 0
    %1622 = vmatprep.subr.bf16.mxu0 0
    %1623 = vmatpush1.bf16.msra.mxu0 0
    %1624 = vmatprep.subr.bf16.mxu0 0
    %1625 = vmatpush1.bf16.msra.mxu0 0
    %1626 = vmatprep.subr.bf16.mxu0 0
    %1627 = vmatpush1.bf16.msra.mxu0 0
    %1628 = vmatprep.subr.bf16.mxu0 0
    %1629 = vmatpush1.bf16.msra.mxu0 0
    %1630 = vmatprep.subr.bf16.mxu0 0
    %1631 = vmatpush1.bf16.msra.mxu0 0
    %1632 = vmatprep.subr.bf16.mxu0 0
    %1633 = vmatpush1.bf16.msra.mxu0 0
    %1634 = vmatprep.mubr.bf16.mxu0 0
    %1635 = vmatmul.mubr.bf16.gmra.mrb[0].mxu0 %v1600
    %v1636 = vpop.f32.mrb[0].mxu0
    %v1637 = vadd.f32 %v1584, %v1636
    %v1638 = vpop.f32.mrb[0].mxu0
    %v1639 = vpop.f32.mrb[0].mxu0
    %v1640 = vpop.f32.mrb[0].mxu0
    %1641 = vdwg.mxu0
    %v1642 = vmax.f32 %v1637, 0.0
    %v1643 = vld [vmem:[%s9] sm:$0xf]
    %v1644 = vpack.c.bf16 %v1642, %v1642
    %v1646 = vsel %vm1598, %v1643, 0
    %v1649 = vsel %vm1598, %v1644, 0
    %1651 = vmatprep.subr.bf16.mxu0 0
    %1652 = vmatpush1.bf16.xpose.msra.mxu0 %v1649
    %1653 = vmatprep.subr.bf16.mxu0 0
    %1654 = vmatpush1.bf16.xpose.msra.mxu0 0
    %1655 = vmatprep.subr.bf16.mxu0 0
    %1656 = vmatpush1.bf16.xpose.msra.mxu0 0
    %1657 = vmatprep.subr.bf16.mxu0 0
    %1658 = vmatpush1.bf16.xpose.msra.mxu0 0
    %1659 = vmatprep.subr.bf16.mxu0 0
    %1660 = vmatpush1.bf16.xpose.msra.mxu0 0
    %1661 = vmatprep.subr.bf16.mxu0 0
    %1662 = vmatpush1.bf16.xpose.msra.mxu0 0
    %1663 = vmatprep.subr.bf16.mxu0 0
    %1664 = vmatpush1.bf16.xpose.msra.mxu0 0
    %1665 = vmatprep.subr.bf16.mxu0 0
    %1666 = vmatpush1.bf16.xpose.msra.mxu0 0
    %1667 = vmatprep.subr.bf16.mxu0 0
    %1668 = vmatpush1.bf16.xpose.msra.mxu0 0
    %1669 = vmatprep.subr.bf16.mxu0 0
    %1670 = vmatpush1.bf16.xpose.msra.mxu0 0
    %1671 = vmatprep.subr.bf16.mxu0 0
    %1672 = vmatpush1.bf16.xpose.msra.mxu0 0
    %1673 = vmatprep.subr.bf16.mxu0 0
    %1674 = vmatpush1.bf16.xpose.msra.mxu0 0
    %1675 = vmatprep.subr.bf16.mxu0 0
    %1676 = vmatpush1.bf16.xpose.msra.mxu0 0
    %1677 = vmatprep.subr.bf16.mxu0 0
    %1678 = vmatpush1.bf16.xpose.msra.mxu0 0
    %1679 = vmatprep.subr.bf16.mxu0 0
    %1680 = vmatpush1.bf16.xpose.msra.mxu0 0
    %1681 = vmatprep.subr.bf16.mxu0 0
    %1682 = vmatpush1.bf16.xpose.msra.mxu0 0
    %1683 = vmatprep.mubr.bf16.mxu0 0
    %1684 = vmatmul.mubr.bf16.gmra.mrb[0].mxu0 %v1646
    %v1685 = vpop.f32.mrb[0].mxu0
    %v1686 = vadd.f32 0.0, %v1685
    %v1687 = vpop.f32.mrb[0].mxu0
    %v1688 = vpop.f32.mrb[0].mxu0
    %v1689 = vpop.f32.mrb[0].mxu0
    %1690 = vdwg.mxu0
    %v1691 = vld [vmem:[#allocation2] sm:$0x1]
    %1693 = vset.pattern.permute.xlu0 0
    %1694 = vperm.xlu0 %1693, %v1691
    %v1695 = vpop.permute.xlu0 %1694
    %v1697 = vlaneseq
    %v1698 = vshrl.u32 %v1697, 7
    %v1699 = vsub.s32 0, %v1698
    %v1700 = vrot.slane %v1695, %v1699
    %v1701 = vadd.f32 %v1686, %v1700
    %v1702 = vxor.u32 %v1701, 2147483648
    %v1703 = vmul.f32 %v1702, 1.442695
    %v1704 = vpow.pop %v1703
    %v1705 = vadd.f32 %v1704, 1.0
    %v1706 = vrcp.pop %v1705
    %v1707 = vmul.f32 1.0, %v1706
    %vm1708 = vcmask 57344
    %1709 = vst.msk [vmem:[%s11] sm:$0x1] %vm1708, %v1707
    // Predicated region
    $region50: #{encas12a_forward.1} parent=1 // pred_check
      _
    $region51: #{encas12a_forward.1} parent=1 // pred_check_branch
      %1711 = sbr.rel (0) target = $region53
    $region52: #{encas12a_forward.1} parent=1 // pred_region
      _
    $region53: #{encas12a_forward.1} parent=1 // pred_fallthru
      _
    // Predicated region
    $region54: #{encas12a_forward.1} parent=1 // pred_check
      _
    $region55: #{encas12a_forward.1} parent=1 // pred_check_branch
      %1713 = sbr.rel (0) target = $region57
    $region56: #{encas12a_forward.1} parent=1 // pred_region
      _
    $region57: #{encas12a_forward.1} parent=1 // pred_fallthru
      _
    %1714 = vsyncpa [#allocation4], 1

</llo_original>
